<compile_context>
chip_gen: v7x
topology: tpu7x:2x2x1
jax: 0.10.0
libtpu: 0.0.40
codegen_flags: <defaults>
</compile_context>

<pallas_src>
import functools

import jax
import jax.numpy as jnp
from jax import lax
from jax.experimental import pallas as pl
from jax.experimental.pallas import tpu as pltpu


def _round_up(x, m):
    return (x + m - 1) // m * m


def _largest_divisor_leq(n, bound):
    """Largest divisor of n that is <= bound (>= 1)."""
    for d in range(min(n, bound), 0, -1):
        if n % d == 0:
            return d
    return 1


def _largest_tile_dividing(s_pad, max_rows):
    """Largest multiple of 8 that divides s_pad and is <= max_rows (falls back to 8)."""
    cand = (min(s_pad, max(max_rows, 8)) // 8) * 8
    while cand >= 8:
        if s_pad % cand == 0:
            return cand
        cand -= 8
    return 8


def _embed_kernel(ids_ref, tok_hbm, pos_ref, out_ref, gbuf, sems, *,
                  TQ, n_chunks, chunk_stride, rows_per_chunk):
    """One grid step: gather this block's token-embedding rows (prefetched last step, except for
    block 0), prefetch the next block's rows, add the position slab, store.

    ids_ref : SMEM (B*S_pad,) int32     -- scalar-prefetched flat token ids
    tok_hbm : HBM  (vocab, D_pad)       -- token table left in HBM (manual DMA row gather)
    pos_ref : VMEM (TQ, D_pad)          -- position slab block (constant in the packed regime)
    out_ref : VMEM (TQ, D_pad)          -- dense output block
    gbuf    : VMEM (2, TQ, D_pad)       -- double-buffered gather landing buffer
    sems    : DMA semaphores, shape (2,)

    Static layout params: a block holds `n_chunks` chunks of `chunk_stride` rows each
    (chunk = one sequence in the packed regime); only the first `rows_per_chunk` rows of each
    chunk are real tokens (the rest are sequence padding and are never gathered).
    """
    blk = pl.program_id(0)
    nblk = pl.num_programs(0)
    n_valid = n_chunks * rows_per_chunk          # rows actually gathered per block (static)

    slot = lax.rem(blk, 2)
    next_slot = 1 - slot

    def issue_block(b, s):
        base = b * TQ
        for c in range(n_chunks):                # static & small (#sequences per block)
            src_base = base + c * chunk_stride
            dst_base = c * chunk_stride

            def issue_row(i, carry):
                tok_id = ids_ref[src_base + i]
                pltpu.make_async_copy(
                    tok_hbm.at[tok_id],
                    gbuf.at[s, dst_base + i],
                    sems.at[s],
                ).start()
                return carry

            _ = lax.fori_loop(0, rows_per_chunk, issue_row, 0,
                              unroll=min(8, rows_per_chunk))

    # Prime the pipeline: the very first grid step gathers its own rows.
    @pl.when(blk == 0)
    def _():
        issue_block(blk, slot)

    # Cross-step double buffering: issue block blk+1's gathers before waiting on block blk's,
    # so next block's HBM reads overlap this block's wait / add / store / output writeback.
    @pl.when(blk + 1 < nblk)
    def _():
        issue_block(blk + 1, next_slot)

    # Single wait covering all rows gathered into this slot: the descriptor is never started,
    # it only provides the byte count (n_valid row copies of (D_pad,) each signalled sems[slot]).
    pltpu.make_async_copy(
        gbuf.at[next_slot, pl.ds(0, n_valid)],   # dummy src (shape/byte accounting only)
        gbuf.at[slot, pl.ds(0, n_valid)],
        sems.at[slot],
    ).wait()

    # One dense (TQ, D_pad) add + lane-dense store. Padded rows hold stale data and are
    # discarded by the wrapper slice.
    out_ref[...] = (gbuf[slot] + pos_ref[...]).astype(out_ref.dtype)


def clip_text_embeddings(input_ids, token_embedding, position_embedding,
                         *, max_block_tokens=1024):
    """input_ids: (B, S) int; token_embedding: (vocab, D); position_embedding: (max_pos, D).
    Returns (B, S, D) in the promoted dtype of the two tables.

    Note: out-of-range token ids are clipped to [0, vocab-1] (OOB-DMA guard) rather than raising,
    which differs from framework semantics for invalid ids.
    """
    B, S = input_ids.shape
    vocab, D = token_embedding.shape
    max_pos = position_embedding.shape[0]
    if S > max_pos:
        raise ValueError(f"seq_length {S} exceeds max_position_embeddings {max_pos}")

    out_dtype = jnp.result_type(token_embedding.dtype, position_embedding.dtype)

    S_pad = _round_up(S, 8)
    D_pad = _round_up(D, 128)   # lane-dense stores; real CLIP hidden sizes need no padding

    # ---- choose block layout ----
    if S_pad <= max_block_tokens:
        # Packed regime: a block is n_seq whole (padded) sequences.
        n_seq = _largest_divisor_leq(B, max(1, max_block_tokens // S_pad))
        TQ = n_seq * S_pad
        n_chunks, chunk_stride, rows_per_chunk = n_seq, S_pad, S
        pos_rows = TQ            # position slab pre-tiled to one constant block
    else:
        # Long-sequence regime: blocks tile within a sequence (TQ | S_pad).
        TQ = _largest_tile_dividing(S_pad, max_block_tokens)
        n_chunks, chunk_stride, rows_per_chunk = 1, TQ, TQ
        pos_rows = S_pad
    num_blocks = (B * S_pad) // TQ
    num_pos_blocks = pos_rows // TQ

    # ---- flat ids: pad seq to S_pad (padded slots id 0) and clip to guard OOB row DMA ----
    ids = jnp.clip(input_ids.astype(jnp.int32), 0, vocab - 1)
    if S_pad != S:
        ids = jnp.pad(ids, ((0, 0), (0, S_pad - S)))
    flat_ids = ids.reshape(B * S_pad)

    # ---- tables (pad hidden dim only if non-standard; pad positions to S_pad rows) ----
    tok_table = token_embedding
    pos_base = position_embedding[: min(S_pad, max_pos)]
    if pos_base.shape[0] < S_pad:
        pos_base = jnp.pad(pos_base, ((0, S_pad - pos_base.shape[0]), (0, 0)))
    if D_pad != D:
        tok_table = jnp.pad(tok_table, ((0, 0), (0, D_pad - D)))
        pos_base = jnp.pad(pos_base, ((0, 0), (0, D_pad - D)))
    pos_slab = pos_base if pos_rows == S_pad else jnp.tile(pos_base, (pos_rows // S_pad, 1))

    kernel = functools.partial(_embed_kernel, TQ=TQ, n_chunks=n_chunks,
                               chunk_stride=chunk_stride, rows_per_chunk=rows_per_chunk)

    if num_pos_blocks == 1:
        pos_index_map = lambda blk, ids: (0, 0)                      # resident, fetched once
    else:
        pos_index_map = lambda blk, ids, n=num_pos_blocks: (blk % n, 0)

    grid_spec = pltpu.PrefetchScalarGridSpec(
        num_scalar_prefetch=1,                       # flat_ids -> SMEM, visible to kernel body
        grid=(num_blocks,),
        in_specs=[
            pl.BlockSpec(memory_space=pl.ANY),       # token table stays in HBM
            pl.BlockSpec((TQ, D_pad), pos_index_map),
        ],
        out_specs=pl.BlockSpec((TQ, D_pad), lambda blk, ids: (blk, 0)),
        scratch_shapes=[
            pltpu.VMEM((2, TQ, D_pad), tok_table.dtype),   # double-buffered gather buffer
            pltpu.SemaphoreType.DMA((2,)),
        ],
    )

    tok_bytes = jnp.dtype(tok_table.dtype).itemsize
    pos_bytes = jnp.dtype(pos_slab.dtype).itemsize
    out_bytes = jnp.dtype(out_dtype).itemsize

    cost = pl.CostEstimate(
        flops=B * S_pad * D_pad,
        transcendentals=0,
        bytes_accessed=(num_blocks * n_chunks * rows_per_chunk * D_pad * tok_bytes
                        + B * S_pad * D_pad * out_bytes
                        + pos_rows * D_pad * pos_bytes
                        + B * S_pad * 4),
    )

    vmem_need = (2 * TQ * D_pad * tok_bytes        # gather double buffer
                 + 2 * TQ * D_pad * out_bytes      # pallas output double buffer
                 + 2 * TQ * D_pad * pos_bytes      # pallas position-slab double buffer
                 + (2 << 20))
    vmem_limit = max(int(vmem_need), 32 << 20)

    out_flat = pl.pallas_call(
        kernel,
        grid_spec=grid_spec,
        out_shape=jax.ShapeDtypeStruct((B * S_pad, D_pad), out_dtype),
        compiler_params=pltpu.CompilerParams(
            # "arbitrary": the cross-step prefetch is primed at blk == 0, so the grid must run
            # sequentially on one TensorCore (a core-split grid would deadlock waiting on a
            # never-signalled semaphore). Blocks are few and fat, so this costs little; shard
            # over batch above this call to use both TCs on v7x.
            dimension_semantics=("arbitrary",),
            vmem_limit_bytes=vmem_limit,
        ),
        cost_estimate=cost,
    )(flat_ids, tok_table, pos_slab)

    return out_flat.reshape(B, S_pad, D_pad)[:, :S, :D]


if __name__ == "__main__":
    key = jax.random.PRNGKey(0)

    def run_case(case_key, B, S, vocab, max_pos, D, max_block_tokens):
        k_tok, k_pos, k_ids = jax.random.split(case_key, 3)
        tok = jax.random.normal(k_tok, (vocab, D), dtype=jnp.float32)
        pos = jax.random.normal(k_pos, (max_pos, D), dtype=jnp.float32)
        ids = jax.random.randint(k_ids, (B, S), 0, vocab, dtype=jnp.int32)
        out = clip_text_embeddings(ids, tok, pos, max_block_tokens=max_block_tokens)
        out = jax.block_until_ready(out)
        ref = tok[ids] + pos[jnp.arange(S)][None, :, :]
        assert out.shape == (B, S, D), (out.shape, (B, S, D))
        assert jnp.allclose(out, ref, atol=1e-6), "mismatch vs reference"

    k1, k2, k3 = jax.random.split(key, 3)
    # Case 1: default config — single block packs both sequences; padded hidden dim (32 -> 128).
    run_case(k1, B=2, S=8, vocab=64, max_pos=16, D=32, max_block_tokens=1024)
    # Case 2: multi-block path — exercises cross-step double-buffered gather (4 grid steps)
    # and skipping of padded sequence-tail rows (S=7 -> S_pad=8).
    run_case(k2, B=8, S=7, vocab=64, max_pos=16, D=32, max_block_tokens=16)
    # Case 3: long-sequence regime — blocks tile within a sequence, position block cycles.
    run_case(k3, B=2, S=40, vocab=64, max_pos=48, D=32, max_block_tokens=16)

    print("KERNEL_OK")
</pallas_src>

<mosaic_0001>
module attributes {stable_mosaic.version = 11 : i64} {
  func.func @_embed_kernel(%arg0: i32, %arg1: memref<16xi32, #tpu.memory_space<smem>>, %arg2: memref<64x128xf32, #tpu.memory_space<any>>, %arg3: memref<16x128xf32, #tpu.memory_space<vmem>>, %arg4: memref<16x128xf32, #tpu.memory_space<vmem>>, %arg5: memref<2x16x128xf32, #tpu.memory_space<vmem>>, %arg6: memref<2x!tpu.dma_semaphore, #tpu.memory_space<semaphore_mem>>) attributes {dimension_semantics = [#tpu.dimension_semantics<arbitrary>], iteration_bounds = array<i64: 1>, scalar_prefetch = 1 : i64, scratch_operands = 2 : i64, tpu.core_type = #tpu.core_type<tc>, window_params = [{}, {pipeline_mode = #tpu.pipeline_mode<synchronous>, transform_indices = @transform_1, window_bounds = array<i64: 16, 128>}, {transform_indices = @transform_2, window_bounds = array<i64: 16, 128>}]} {
    %c2_i32 = arith.constant 2 : i32
    %0 = arith.remsi %arg0, %c2_i32 : i32
    %c1_i32 = arith.constant 1 : i32
    %1 = arith.subi %c1_i32, %0 : i32
    %c0_i32 = arith.constant 0 : i32
    %2 = arith.cmpi eq, %arg0, %c0_i32 : i32
    %3 = arith.extui %2 : i1 to i32
    %c0_i32_0 = arith.constant 0 : i32
    %4 = arith.cmpi ne, %3, %c0_i32_0 : i32
    scf.if %4 {
      %c16_i32 = arith.constant 16 : i32
      %21 = arith.muli %arg0, %c16_i32 : i32
      %c0_i32_13 = arith.constant 0 : i32
      %22 = arith.addi %21, %c0_i32_13 : i32
      %c0_i32_14 = arith.constant 0 : i32
      %23 = arith.addi %22, %c0_i32_14 : i32
      %24 = arith.index_cast %23 : i32 to index
      %25 = memref.load %arg1[%24] : memref<16xi32, #tpu.memory_space<smem>>
      %c0_i32_15 = arith.constant 0 : i32
      %26 = arith.addi %c0_i32_15, %c0_i32_14 : i32
      %c0_i32_16 = arith.constant 0 : i32
      %27 = tpu.memref_slice %arg2[%25, %c0_i32_16] : memref<64x128xf32, #tpu.memory_space<any>> -> memref<1x128xf32, #tpu.memory_space<any>>
      %28 = tpu.memref_squeeze %27 : memref<1x128xf32, #tpu.memory_space<any>> -> memref<128xf32, #tpu.memory_space<any>>
      %c0_i32_17 = arith.constant 0 : i32
      %29 = tpu.memref_slice %arg5[%0, %26, %c0_i32_17] : memref<2x16x128xf32, #tpu.memory_space<vmem>> -> memref<1x1x128xf32, #tpu.memory_space<vmem>>
      %30 = tpu.memref_squeeze %29 : memref<1x1x128xf32, #tpu.memory_space<vmem>> -> memref<128xf32, #tpu.memory_space<vmem>>
      %31 = tpu.memref_slice %arg6[%0] : memref<2x!tpu.dma_semaphore, #tpu.memory_space<semaphore_mem>> -> memref<1x!tpu.dma_semaphore, #tpu.memory_space<semaphore_mem>>
      %32 = tpu.memref_squeeze %31 : memref<1x!tpu.dma_semaphore, #tpu.memory_space<semaphore_mem>> -> memref<!tpu.dma_semaphore, #tpu.memory_space<semaphore_mem>>
      tpu.enqueue_dma source(%28 : memref<128xf32, #tpu.memory_space<any>>) target(%30 : memref<128xf32, #tpu.memory_space<vmem>>) target_semaphore(%32 : memref<!tpu.dma_semaphore, #tpu.memory_space<semaphore_mem>>)
      %c1_i32_18 = arith.constant 1 : i32
      %33 = arith.addi %22, %c1_i32_18 : i32
      %34 = arith.index_cast %33 : i32 to index
      %35 = memref.load %arg1[%34] : memref<16xi32, #tpu.memory_space<smem>>
      %c0_i32_19 = arith.constant 0 : i32
      %36 = arith.addi %c0_i32_19, %c1_i32_18 : i32
      %c0_i32_20 = arith.constant 0 : i32
      %37 = tpu.memref_slice %arg2[%35, %c0_i32_20] : memref<64x128xf32, #tpu.memory_space<any>> -> memref<1x128xf32, #tpu.memory_space<any>>
      %38 = tpu.memref_squeeze %37 : memref<1x128xf32, #tpu.memory_space<any>> -> memref<128xf32, #tpu.memory_space<any>>
      %c0_i32_21 = arith.constant 0 : i32
      %39 = tpu.memref_slice %arg5[%0, %36, %c0_i32_21] : memref<2x16x128xf32, #tpu.memory_space<vmem>> -> memref<1x1x128xf32, #tpu.memory_space<vmem>>
      %40 = tpu.memref_squeeze %39 : memref<1x1x128xf32, #tpu.memory_space<vmem>> -> memref<128xf32, #tpu.memory_space<vmem>>
      %41 = tpu.memref_slice %arg6[%0] : memref<2x!tpu.dma_semaphore, #tpu.memory_space<semaphore_mem>> -> memref<1x!tpu.dma_semaphore, #tpu.memory_space<semaphore_mem>>
      %42 = tpu.memref_squeeze %41 : memref<1x!tpu.dma_semaphore, #tpu.memory_space<semaphore_mem>> -> memref<!tpu.dma_semaphore, #tpu.memory_space<semaphore_mem>>
      tpu.enqueue_dma source(%38 : memref<128xf32, #tpu.memory_space<any>>) target(%40 : memref<128xf32, #tpu.memory_space<vmem>>) target_semaphore(%42 : memref<!tpu.dma_semaphore, #tpu.memory_space<semaphore_mem>>)
      %c2_i32_22 = arith.constant 2 : i32
      %43 = arith.addi %22, %c2_i32_22 : i32
      %44 = arith.index_cast %43 : i32 to index
      %45 = memref.load %arg1[%44] : memref<16xi32, #tpu.memory_space<smem>>
      %c0_i32_23 = arith.constant 0 : i32
      %46 = arith.addi %c0_i32_23, %c2_i32_22 : i32
      %c0_i32_24 = arith.constant 0 : i32
      %47 = tpu.memref_slice %arg2[%45, %c0_i32_24] : memref<64x128xf32, #tpu.memory_space<any>> -> memref<1x128xf32, #tpu.memory_space<any>>
      %48 = tpu.memref_squeeze %47 : memref<1x128xf32, #tpu.memory_space<any>> -> memref<128xf32, #tpu.memory_space<any>>
      %c0_i32_25 = arith.constant 0 : i32
      %49 = tpu.memref_slice %arg5[%0, %46, %c0_i32_25] : memref<2x16x128xf32, #tpu.memory_space<vmem>> -> memref<1x1x128xf32, #tpu.memory_space<vmem>>
      %50 = tpu.memref_squeeze %49 : memref<1x1x128xf32, #tpu.memory_space<vmem>> -> memref<128xf32, #tpu.memory_space<vmem>>
      %51 = tpu.memref_slice %arg6[%0] : memref<2x!tpu.dma_semaphore, #tpu.memory_space<semaphore_mem>> -> memref<1x!tpu.dma_semaphore, #tpu.memory_space<semaphore_mem>>
      %52 = tpu.memref_squeeze %51 : memref<1x!tpu.dma_semaphore, #tpu.memory_space<semaphore_mem>> -> memref<!tpu.dma_semaphore, #tpu.memory_space<semaphore_mem>>
      tpu.enqueue_dma source(%48 : memref<128xf32, #tpu.memory_space<any>>) target(%50 : memref<128xf32, #tpu.memory_space<vmem>>) target_semaphore(%52 : memref<!tpu.dma_semaphore, #tpu.memory_space<semaphore_mem>>)
      %c3_i32 = arith.constant 3 : i32
      %53 = arith.addi %22, %c3_i32 : i32
      %54 = arith.index_cast %53 : i32 to index
      %55 = memref.load %arg1[%54] : memref<16xi32, #tpu.memory_space<smem>>
      %c0_i32_26 = arith.constant 0 : i32
      %56 = arith.addi %c0_i32_26, %c3_i32 : i32
      %c0_i32_27 = arith.constant 0 : i32
      %57 = tpu.memref_slice %arg2[%55, %c0_i32_27] : memref<64x128xf32, #tpu.memory_space<any>> -> memref<1x128xf32, #tpu.memory_space<any>>
      %58 = tpu.memref_squeeze %57 : memref<1x128xf32, #tpu.memory_space<any>> -> memref<128xf32, #tpu.memory_space<any>>
      %c0_i32_28 = arith.constant 0 : i32
      %59 = tpu.memref_slice %arg5[%0, %56, %c0_i32_28] : memref<2x16x128xf32, #tpu.memory_space<vmem>> -> memref<1x1x128xf32, #tpu.memory_space<vmem>>
      %60 = tpu.memref_squeeze %59 : memref<1x1x128xf32, #tpu.memory_space<vmem>> -> memref<128xf32, #tpu.memory_space<vmem>>
      %61 = tpu.memref_slice %arg6[%0] : memref<2x!tpu.dma_semaphore, #tpu.memory_space<semaphore_mem>> -> memref<1x!tpu.dma_semaphore, #tpu.memory_space<semaphore_mem>>
      %62 = tpu.memref_squeeze %61 : memref<1x!tpu.dma_semaphore, #tpu.memory_space<semaphore_mem>> -> memref<!tpu.dma_semaphore, #tpu.memory_space<semaphore_mem>>
      tpu.enqueue_dma source(%58 : memref<128xf32, #tpu.memory_space<any>>) target(%60 : memref<128xf32, #tpu.memory_space<vmem>>) target_semaphore(%62 : memref<!tpu.dma_semaphore, #tpu.memory_space<semaphore_mem>>)
      %c4_i32 = arith.constant 4 : i32
      %63 = arith.addi %22, %c4_i32 : i32
      %64 = arith.index_cast %63 : i32 to index
      %65 = memref.load %arg1[%64] : memref<16xi32, #tpu.memory_space<smem>>
      %c0_i32_29 = arith.constant 0 : i32
      %66 = arith.addi %c0_i32_29, %c4_i32 : i32
      %c0_i32_30 = arith.constant 0 : i32
      %67 = tpu.memref_slice %arg2[%65, %c0_i32_30] : memref<64x128xf32, #tpu.memory_space<any>> -> memref<1x128xf32, #tpu.memory_space<any>>
      %68 = tpu.memref_squeeze %67 : memref<1x128xf32, #tpu.memory_space<any>> -> memref<128xf32, #tpu.memory_space<any>>
      %c0_i32_31 = arith.constant 0 : i32
      %69 = tpu.memref_slice %arg5[%0, %66, %c0_i32_31] : memref<2x16x128xf32, #tpu.memory_space<vmem>> -> memref<1x1x128xf32, #tpu.memory_space<vmem>>
      %70 = tpu.memref_squeeze %69 : memref<1x1x128xf32, #tpu.memory_space<vmem>> -> memref<128xf32, #tpu.memory_space<vmem>>
      %71 = tpu.memref_slice %arg6[%0] : memref<2x!tpu.dma_semaphore, #tpu.memory_space<semaphore_mem>> -> memref<1x!tpu.dma_semaphore, #tpu.memory_space<semaphore_mem>>
      %72 = tpu.memref_squeeze %71 : memref<1x!tpu.dma_semaphore, #tpu.memory_space<semaphore_mem>> -> memref<!tpu.dma_semaphore, #tpu.memory_space<semaphore_mem>>
      tpu.enqueue_dma source(%68 : memref<128xf32, #tpu.memory_space<any>>) target(%70 : memref<128xf32, #tpu.memory_space<vmem>>) target_semaphore(%72 : memref<!tpu.dma_semaphore, #tpu.memory_space<semaphore_mem>>)
      %c5_i32 = arith.constant 5 : i32
      %73 = arith.addi %22, %c5_i32 : i32
      %74 = arith.index_cast %73 : i32 to index
      %75 = memref.load %arg1[%74] : memref<16xi32, #tpu.memory_space<smem>>
      %c0_i32_32 = arith.constant 0 : i32
      %76 = arith.addi %c0_i32_32, %c5_i32 : i32
      %c0_i32_33 = arith.constant 0 : i32
      %77 = tpu.memref_slice %arg2[%75, %c0_i32_33] : memref<64x128xf32, #tpu.memory_space<any>> -> memref<1x128xf32, #tpu.memory_space<any>>
      %78 = tpu.memref_squeeze %77 : memref<1x128xf32, #tpu.memory_space<any>> -> memref<128xf32, #tpu.memory_space<any>>
      %c0_i32_34 = arith.constant 0 : i32
      %79 = tpu.memref_slice %arg5[%0, %76, %c0_i32_34] : memref<2x16x128xf32, #tpu.memory_space<vmem>> -> memref<1x1x128xf32, #tpu.memory_space<vmem>>
      %80 = tpu.memref_squeeze %79 : memref<1x1x128xf32, #tpu.memory_space<vmem>> -> memref<128xf32, #tpu.memory_space<vmem>>
      %81 = tpu.memref_slice %arg6[%0] : memref<2x!tpu.dma_semaphore, #tpu.memory_space<semaphore_mem>> -> memref<1x!tpu.dma_semaphore, #tpu.memory_space<semaphore_mem>>
      %82 = tpu.memref_squeeze %81 : memref<1x!tpu.dma_semaphore, #tpu.memory_space<semaphore_mem>> -> memref<!tpu.dma_semaphore, #tpu.memory_space<semaphore_mem>>
      tpu.enqueue_dma source(%78 : memref<128xf32, #tpu.memory_space<any>>) target(%80 : memref<128xf32, #tpu.memory_space<vmem>>) target_semaphore(%82 : memref<!tpu.dma_semaphore, #tpu.memory_space<semaphore_mem>>)
      %c6_i32 = arith.constant 6 : i32
      %83 = arith.addi %22, %c6_i32 : i32
      %84 = arith.index_cast %83 : i32 to index
      %85 = memref.load %arg1[%84] : memref<16xi32, #tpu.memory_space<smem>>
      %c0_i32_35 = arith.constant 0 : i32
      %86 = arith.addi %c0_i32_35, %c6_i32 : i32
      %c0_i32_36 = arith.constant 0 : i32
      %87 = tpu.memref_slice %arg2[%85, %c0_i32_36] : memref<64x128xf32, #tpu.memory_space<any>> -> memref<1x128xf32, #tpu.memory_space<any>>
      %88 = tpu.memref_squeeze %87 : memref<1x128xf32, #tpu.memory_space<any>> -> memref<128xf32, #tpu.memory_space<any>>
      %c0_i32_37 = arith.constant 0 : i32
      %89 = tpu.memref_slice %arg5[%0, %86, %c0_i32_37] : memref<2x16x128xf32, #tpu.memory_space<vmem>> -> memref<1x1x128xf32, #tpu.memory_space<vmem>>
      %90 = tpu.memref_squeeze %89 : memref<1x1x128xf32, #tpu.memory_space<vmem>> -> memref<128xf32, #tpu.memory_space<vmem>>
      %91 = tpu.memref_slice %arg6[%0] : memref<2x!tpu.dma_semaphore, #tpu.memory_space<semaphore_mem>> -> memref<1x!tpu.dma_semaphore, #tpu.memory_space<semaphore_mem>>
      %92 = tpu.memref_squeeze %91 : memref<1x!tpu.dma_semaphore, #tpu.memory_space<semaphore_mem>> -> memref<!tpu.dma_semaphore, #tpu.memory_space<semaphore_mem>>
      tpu.enqueue_dma source(%88 : memref<128xf32, #tpu.memory_space<any>>) target(%90 : memref<128xf32, #tpu.memory_space<vmem>>) target_semaphore(%92 : memref<!tpu.dma_semaphore, #tpu.memory_space<semaphore_mem>>)
      %c7_i32 = arith.constant 7 : i32
      %93 = arith.addi %22, %c7_i32 : i32
      %94 = arith.index_cast %93 : i32 to index
      %95 = memref.load %arg1[%94] : memref<16xi32, #tpu.memory_space<smem>>
      %c0_i32_38 = arith.constant 0 : i32
      %96 = arith.addi %c0_i32_38, %c7_i32 : i32
      %c0_i32_39 = arith.constant 0 : i32
      %97 = tpu.memref_slice %arg2[%95, %c0_i32_39] : memref<64x128xf32, #tpu.memory_space<any>> -> memref<1x128xf32, #tpu.memory_space<any>>
      %98 = tpu.memref_squeeze %97 : memref<1x128xf32, #tpu.memory_space<any>> -> memref<128xf32, #tpu.memory_space<any>>
      %c0_i32_40 = arith.constant 0 : i32
      %99 = tpu.memref_slice %arg5[%0, %96, %c0_i32_40] : memref<2x16x128xf32, #tpu.memory_space<vmem>> -> memref<1x1x128xf32, #tpu.memory_space<vmem>>
      %100 = tpu.memref_squeeze %99 : memref<1x1x128xf32, #tpu.memory_space<vmem>> -> memref<128xf32, #tpu.memory_space<vmem>>
      %101 = tpu.memref_slice %arg6[%0] : memref<2x!tpu.dma_semaphore, #tpu.memory_space<semaphore_mem>> -> memref<1x!tpu.dma_semaphore, #tpu.memory_space<semaphore_mem>>
      %102 = tpu.memref_squeeze %101 : memref<1x!tpu.dma_semaphore, #tpu.memory_space<semaphore_mem>> -> memref<!tpu.dma_semaphore, #tpu.memory_space<semaphore_mem>>
      tpu.enqueue_dma source(%98 : memref<128xf32, #tpu.memory_space<any>>) target(%100 : memref<128xf32, #tpu.memory_space<vmem>>) target_semaphore(%102 : memref<!tpu.dma_semaphore, #tpu.memory_space<semaphore_mem>>)
      %c8_i32 = arith.constant 8 : i32
      %c8_i32_41 = arith.constant 8 : i32
      %103 = arith.addi %21, %c8_i32_41 : i32
      %c0_i32_42 = arith.constant 0 : i32
      %104 = arith.addi %103, %c0_i32_42 : i32
      %105 = arith.index_cast %104 : i32 to index
      %106 = memref.load %arg1[%105] : memref<16xi32, #tpu.memory_space<smem>>
      %c8_i32_43 = arith.constant 8 : i32
      %107 = arith.addi %c8_i32_43, %c0_i32_42 : i32
      %c0_i32_44 = arith.constant 0 : i32
      %108 = tpu.memref_slice %arg2[%106, %c0_i32_44] : memref<64x128xf32, #tpu.memory_space<any>> -> memref<1x128xf32, #tpu.memory_space<any>>
      %109 = tpu.memref_squeeze %108 : memref<1x128xf32, #tpu.memory_space<any>> -> memref<128xf32, #tpu.memory_space<any>>
      %c0_i32_45 = arith.constant 0 : i32
      %110 = tpu.memref_slice %arg5[%0, %107, %c0_i32_45] : memref<2x16x128xf32, #tpu.memory_space<vmem>> -> memref<1x1x128xf32, #tpu.memory_space<vmem>>
      %111 = tpu.memref_squeeze %110 : memref<1x1x128xf32, #tpu.memory_space<vmem>> -> memref<128xf32, #tpu.memory_space<vmem>>
      %112 = tpu.memref_slice %arg6[%0] : memref<2x!tpu.dma_semaphore, #tpu.memory_space<semaphore_mem>> -> memref<1x!tpu.dma_semaphore, #tpu.memory_space<semaphore_mem>>
      %113 = tpu.memref_squeeze %112 : memref<1x!tpu.dma_semaphore, #tpu.memory_space<semaphore_mem>> -> memref<!tpu.dma_semaphore, #tpu.memory_space<semaphore_mem>>
      tpu.enqueue_dma source(%109 : memref<128xf32, #tpu.memory_space<any>>) target(%111 : memref<128xf32, #tpu.memory_space<vmem>>) target_semaphore(%113 : memref<!tpu.dma_semaphore, #tpu.memory_space<semaphore_mem>>)
      %c1_i32_46 = arith.constant 1 : i32
      %114 = arith.addi %103, %c1_i32_46 : i32
      %115 = arith.index_cast %114 : i32 to index
      %116 = memref.load %arg1[%115] : memref<16xi32, #tpu.memory_space<smem>>
      %c8_i32_47 = arith.constant 8 : i32
      %117 = arith.addi %c8_i32_47, %c1_i32_46 : i32
      %c0_i32_48 = arith.constant 0 : i32
      %118 = tpu.memref_slice %arg2[%116, %c0_i32_48] : memref<64x128xf32, #tpu.memory_space<any>> -> memref<1x128xf32, #tpu.memory_space<any>>
      %119 = tpu.memref_squeeze %118 : memref<1x128xf32, #tpu.memory_space<any>> -> memref<128xf32, #tpu.memory_space<any>>
      %c0_i32_49 = arith.constant 0 : i32
      %120 = tpu.memref_slice %arg5[%0, %117, %c0_i32_49] : memref<2x16x128xf32, #tpu.memory_space<vmem>> -> memref<1x1x128xf32, #tpu.memory_space<vmem>>
      %121 = tpu.memref_squeeze %120 : memref<1x1x128xf32, #tpu.memory_space<vmem>> -> memref<128xf32, #tpu.memory_space<vmem>>
      %122 = tpu.memref_slice %arg6[%0] : memref<2x!tpu.dma_semaphore, #tpu.memory_space<semaphore_mem>> -> memref<1x!tpu.dma_semaphore, #tpu.memory_space<semaphore_mem>>
      %123 = tpu.memref_squeeze %122 : memref<1x!tpu.dma_semaphore, #tpu.memory_space<semaphore_mem>> -> memref<!tpu.dma_semaphore, #tpu.memory_space<semaphore_mem>>
      tpu.enqueue_dma source(%119 : memref<128xf32, #tpu.memory_space<any>>) target(%121 : memref<128xf32, #tpu.memory_space<vmem>>) target_semaphore(%123 : memref<!tpu.dma_semaphore, #tpu.memory_space<semaphore_mem>>)
      %c2_i32_50 = arith.constant 2 : i32
      %124 = arith.addi %103, %c2_i32_50 : i32
      %125 = arith.index_cast %124 : i32 to index
      %126 = memref.load %arg1[%125] : memref<16xi32, #tpu.memory_space<smem>>
      %c8_i32_51 = arith.constant 8 : i32
      %127 = arith.addi %c8_i32_51, %c2_i32_50 : i32
      %c0_i32_52 = arith.constant 0 : i32
      %128 = tpu.memref_slice %arg2[%126, %c0_i32_52] : memref<64x128xf32, #tpu.memory_space<any>> -> memref<1x128xf32, #tpu.memory_space<any>>
      %129 = tpu.memref_squeeze %128 : memref<1x128xf32, #tpu.memory_space<any>> -> memref<128xf32, #tpu.memory_space<any>>
      %c0_i32_53 = arith.constant 0 : i32
      %130 = tpu.memref_slice %arg5[%0, %127, %c0_i32_53] : memref<2x16x128xf32, #tpu.memory_space<vmem>> -> memref<1x1x128xf32, #tpu.memory_space<vmem>>
      %131 = tpu.memref_squeeze %130 : memref<1x1x128xf32, #tpu.memory_space<vmem>> -> memref<128xf32, #tpu.memory_space<vmem>>
      %132 = tpu.memref_slice %arg6[%0] : memref<2x!tpu.dma_semaphore, #tpu.memory_space<semaphore_mem>> -> memref<1x!tpu.dma_semaphore, #tpu.memory_space<semaphore_mem>>
      %133 = tpu.memref_squeeze %132 : memref<1x!tpu.dma_semaphore, #tpu.memory_space<semaphore_mem>> -> memref<!tpu.dma_semaphore, #tpu.memory_space<semaphore_mem>>
      tpu.enqueue_dma source(%129 : memref<128xf32, #tpu.memory_space<any>>) target(%131 : memref<128xf32, #tpu.memory_space<vmem>>) target_semaphore(%133 : memref<!tpu.dma_semaphore, #tpu.memory_space<semaphore_mem>>)
      %c3_i32_54 = arith.constant 3 : i32
      %134 = arith.addi %103, %c3_i32_54 : i32
      %135 = arith.index_cast %134 : i32 to index
      %136 = memref.load %arg1[%135] : memref<16xi32, #tpu.memory_space<smem>>
      %c8_i32_55 = arith.constant 8 : i32
      %137 = arith.addi %c8_i32_55, %c3_i32_54 : i32
      %c0_i32_56 = arith.constant 0 : i32
      %138 = tpu.memref_slice %arg2[%136, %c0_i32_56] : memref<64x128xf32, #tpu.memory_space<any>> -> memref<1x128xf32, #tpu.memory_space<any>>
      %139 = tpu.memref_squeeze %138 : memref<1x128xf32, #tpu.memory_space<any>> -> memref<128xf32, #tpu.memory_space<any>>
      %c0_i32_57 = arith.constant 0 : i32
      %140 = tpu.memref_slice %arg5[%0, %137, %c0_i32_57] : memref<2x16x128xf32, #tpu.memory_space<vmem>> -> memref<1x1x128xf32, #tpu.memory_space<vmem>>
      %141 = tpu.memref_squeeze %140 : memref<1x1x128xf32, #tpu.memory_space<vmem>> -> memref<128xf32, #tpu.memory_space<vmem>>
      %142 = tpu.memref_slice %arg6[%0] : memref<2x!tpu.dma_semaphore, #tpu.memory_space<semaphore_mem>> -> memref<1x!tpu.dma_semaphore, #tpu.memory_space<semaphore_mem>>
      %143 = tpu.memref_squeeze %142 : memref<1x!tpu.dma_semaphore, #tpu.memory_space<semaphore_mem>> -> memref<!tpu.dma_semaphore, #tpu.memory_space<semaphore_mem>>
      tpu.enqueue_dma source(%139 : memref<128xf32, #tpu.memory_space<any>>) target(%141 : memref<128xf32, #tpu.memory_space<vmem>>) target_semaphore(%143 : memref<!tpu.dma_semaphore, #tpu.memory_space<semaphore_mem>>)
      %c4_i32_58 = arith.constant 4 : i32
      %144 = arith.addi %103, %c4_i32_58 : i32
      %145 = arith.index_cast %144 : i32 to index
      %146 = memref.load %arg1[%145] : memref<16xi32, #tpu.memory_space<smem>>
      %c8_i32_59 = arith.constant 8 : i32
      %147 = arith.addi %c8_i32_59, %c4_i32_58 : i32
      %c0_i32_60 = arith.constant 0 : i32
      %148 = tpu.memref_slice %arg2[%146, %c0_i32_60] : memref<64x128xf32, #tpu.memory_space<any>> -> memref<1x128xf32, #tpu.memory_space<any>>
      %149 = tpu.memref_squeeze %148 : memref<1x128xf32, #tpu.memory_space<any>> -> memref<128xf32, #tpu.memory_space<any>>
      %c0_i32_61 = arith.constant 0 : i32
      %150 = tpu.memref_slice %arg5[%0, %147, %c0_i32_61] : memref<2x16x128xf32, #tpu.memory_space<vmem>> -> memref<1x1x128xf32, #tpu.memory_space<vmem>>
      %151 = tpu.memref_squeeze %150 : memref<1x1x128xf32, #tpu.memory_space<vmem>> -> memref<128xf32, #tpu.memory_space<vmem>>
      %152 = tpu.memref_slice %arg6[%0] : memref<2x!tpu.dma_semaphore, #tpu.memory_space<semaphore_mem>> -> memref<1x!tpu.dma_semaphore, #tpu.memory_space<semaphore_mem>>
      %153 = tpu.memref_squeeze %152 : memref<1x!tpu.dma_semaphore, #tpu.memory_space<semaphore_mem>> -> memref<!tpu.dma_semaphore, #tpu.memory_space<semaphore_mem>>
      tpu.enqueue_dma source(%149 : memref<128xf32, #tpu.memory_space<any>>) target(%151 : memref<128xf32, #tpu.memory_space<vmem>>) target_semaphore(%153 : memref<!tpu.dma_semaphore, #tpu.memory_space<semaphore_mem>>)
      %c5_i32_62 = arith.constant 5 : i32
      %154 = arith.addi %103, %c5_i32_62 : i32
      %155 = arith.index_cast %154 : i32 to index
      %156 = memref.load %arg1[%155] : memref<16xi32, #tpu.memory_space<smem>>
      %c8_i32_63 = arith.constant 8 : i32
      %157 = arith.addi %c8_i32_63, %c5_i32_62 : i32
      %c0_i32_64 = arith.constant 0 : i32
      %158 = tpu.memref_slice %arg2[%156, %c0_i32_64] : memref<64x128xf32, #tpu.memory_space<any>> -> memref<1x128xf32, #tpu.memory_space<any>>
      %159 = tpu.memref_squeeze %158 : memref<1x128xf32, #tpu.memory_space<any>> -> memref<128xf32, #tpu.memory_space<any>>
      %c0_i32_65 = arith.constant 0 : i32
      %160 = tpu.memref_slice %arg5[%0, %157, %c0_i32_65] : memref<2x16x128xf32, #tpu.memory_space<vmem>> -> memref<1x1x128xf32, #tpu.memory_space<vmem>>
      %161 = tpu.memref_squeeze %160 : memref<1x1x128xf32, #tpu.memory_space<vmem>> -> memref<128xf32, #tpu.memory_space<vmem>>
      %162 = tpu.memref_slice %arg6[%0] : memref<2x!tpu.dma_semaphore, #tpu.memory_space<semaphore_mem>> -> memref<1x!tpu.dma_semaphore, #tpu.memory_space<semaphore_mem>>
      %163 = tpu.memref_squeeze %162 : memref<1x!tpu.dma_semaphore, #tpu.memory_space<semaphore_mem>> -> memref<!tpu.dma_semaphore, #tpu.memory_space<semaphore_mem>>
      tpu.enqueue_dma source(%159 : memref<128xf32, #tpu.memory_space<any>>) target(%161 : memref<128xf32, #tpu.memory_space<vmem>>) target_semaphore(%163 : memref<!tpu.dma_semaphore, #tpu.memory_space<semaphore_mem>>)
      %c6_i32_66 = arith.constant 6 : i32
      %164 = arith.addi %103, %c6_i32_66 : i32
      %165 = arith.index_cast %164 : i32 to index
      %166 = memref.load %arg1[%165] : memref<16xi32, #tpu.memory_space<smem>>
      %c8_i32_67 = arith.constant 8 : i32
      %167 = arith.addi %c8_i32_67, %c6_i32_66 : i32
      %c0_i32_68 = arith.constant 0 : i32
      %168 = tpu.memref_slice %arg2[%166, %c0_i32_68] : memref<64x128xf32, #tpu.memory_space<any>> -> memref<1x128xf32, #tpu.memory_space<any>>
      %169 = tpu.memref_squeeze %168 : memref<1x128xf32, #tpu.memory_space<any>> -> memref<128xf32, #tpu.memory_space<any>>
      %c0_i32_69 = arith.constant 0 : i32
      %170 = tpu.memref_slice %arg5[%0, %167, %c0_i32_69] : memref<2x16x128xf32, #tpu.memory_space<vmem>> -> memref<1x1x128xf32, #tpu.memory_space<vmem>>
      %171 = tpu.memref_squeeze %170 : memref<1x1x128xf32, #tpu.memory_space<vmem>> -> memref<128xf32, #tpu.memory_space<vmem>>
      %172 = tpu.memref_slice %arg6[%0] : memref<2x!tpu.dma_semaphore, #tpu.memory_space<semaphore_mem>> -> memref<1x!tpu.dma_semaphore, #tpu.memory_space<semaphore_mem>>
      %173 = tpu.memref_squeeze %172 : memref<1x!tpu.dma_semaphore, #tpu.memory_space<semaphore_mem>> -> memref<!tpu.dma_semaphore, #tpu.memory_space<semaphore_mem>>
      tpu.enqueue_dma source(%169 : memref<128xf32, #tpu.memory_space<any>>) target(%171 : memref<128xf32, #tpu.memory_space<vmem>>) target_semaphore(%173 : memref<!tpu.dma_semaphore, #tpu.memory_space<semaphore_mem>>)
      %c7_i32_70 = arith.constant 7 : i32
      %174 = arith.addi %103, %c7_i32_70 : i32
      %175 = arith.index_cast %174 : i32 to index
      %176 = memref.load %arg1[%175] : memref<16xi32, #tpu.memory_space<smem>>
      %c8_i32_71 = arith.constant 8 : i32
      %177 = arith.addi %c8_i32_71, %c7_i32_70 : i32
      %c0_i32_72 = arith.constant 0 : i32
      %178 = tpu.memref_slice %arg2[%176, %c0_i32_72] : memref<64x128xf32, #tpu.memory_space<any>> -> memref<1x128xf32, #tpu.memory_space<any>>
      %179 = tpu.memref_squeeze %178 : memref<1x128xf32, #tpu.memory_space<any>> -> memref<128xf32, #tpu.memory_space<any>>
      %c0_i32_73 = arith.constant 0 : i32
      %180 = tpu.memref_slice %arg5[%0, %177, %c0_i32_73] : memref<2x16x128xf32, #tpu.memory_space<vmem>> -> memref<1x1x128xf32, #tpu.memory_space<vmem>>
      %181 = tpu.memref_squeeze %180 : memref<1x1x128xf32, #tpu.memory_space<vmem>> -> memref<128xf32, #tpu.memory_space<vmem>>
      %182 = tpu.memref_slice %arg6[%0] : memref<2x!tpu.dma_semaphore, #tpu.memory_space<semaphore_mem>> -> memref<1x!tpu.dma_semaphore, #tpu.memory_space<semaphore_mem>>
      %183 = tpu.memref_squeeze %182 : memref<1x!tpu.dma_semaphore, #tpu.memory_space<semaphore_mem>> -> memref<!tpu.dma_semaphore, #tpu.memory_space<semaphore_mem>>
      tpu.enqueue_dma source(%179 : memref<128xf32, #tpu.memory_space<any>>) target(%181 : memref<128xf32, #tpu.memory_space<vmem>>) target_semaphore(%183 : memref<!tpu.dma_semaphore, #tpu.memory_space<semaphore_mem>>)
      %c8_i32_74 = arith.constant 8 : i32
    } else {
    }
    %c1_i32_1 = arith.constant 1 : i32
    %5 = arith.addi %arg0, %c1_i32_1 : i32
    %c1_i32_2 = arith.constant 1 : i32
    %6 = arith.cmpi slt, %5, %c1_i32_2 : i32
    %7 = arith.extui %6 : i1 to i32
    %c0_i32_3 = arith.constant 0 : i32
    %8 = arith.cmpi ne, %7, %c0_i32_3 : i32
    scf.if %8 {
      %c1_i32_13 = arith.constant 1 : i32
      %21 = arith.addi %arg0, %c1_i32_13 : i32
      %c16_i32 = arith.constant 16 : i32
      %22 = arith.muli %21, %c16_i32 : i32
      %c0_i32_14 = arith.constant 0 : i32
      %23 = arith.addi %22, %c0_i32_14 : i32
      %c0_i32_15 = arith.constant 0 : i32
      %24 = arith.addi %23, %c0_i32_15 : i32
      %25 = arith.index_cast %24 : i32 to index
      %26 = memref.load %arg1[%25] : memref<16xi32, #tpu.memory_space<smem>>
      %c0_i32_16 = arith.constant 0 : i32
      %27 = arith.addi %c0_i32_16, %c0_i32_15 : i32
      %c0_i32_17 = arith.constant 0 : i32
      %28 = tpu.memref_slice %arg2[%26, %c0_i32_17] : memref<64x128xf32, #tpu.memory_space<any>> -> memref<1x128xf32, #tpu.memory_space<any>>
      %29 = tpu.memref_squeeze %28 : memref<1x128xf32, #tpu.memory_space<any>> -> memref<128xf32, #tpu.memory_space<any>>
      %c0_i32_18 = arith.constant 0 : i32
      %30 = tpu.memref_slice %arg5[%1, %27, %c0_i32_18] : memref<2x16x128xf32, #tpu.memory_space<vmem>> -> memref<1x1x128xf32, #tpu.memory_space<vmem>>
      %31 = tpu.memref_squeeze %30 : memref<1x1x128xf32, #tpu.memory_space<vmem>> -> memref<128xf32, #tpu.memory_space<vmem>>
      %32 = tpu.memref_slice %arg6[%1] : memref<2x!tpu.dma_semaphore, #tpu.memory_space<semaphore_mem>> -> memref<1x!tpu.dma_semaphore, #tpu.memory_space<semaphore_mem>>
      %33 = tpu.memref_squeeze %32 : memref<1x!tpu.dma_semaphore, #tpu.memory_space<semaphore_mem>> -> memref<!tpu.dma_semaphore, #tpu.memory_space<semaphore_mem>>
      tpu.enqueue_dma source(%29 : memref<128xf32, #tpu.memory_space<any>>) target(%31 : memref<128xf32, #tpu.memory_space<vmem>>) target_semaphore(%33 : memref<!tpu.dma_semaphore, #tpu.memory_space<semaphore_mem>>)
      %c1_i32_19 = arith.constant 1 : i32
      %34 = arith.addi %23, %c1_i32_19 : i32
      %35 = arith.index_cast %34 : i32 to index
      %36 = memref.load %arg1[%35] : memref<16xi32, #tpu.memory_space<smem>>
      %c0_i32_20 = arith.constant 0 : i32
      %37 = arith.addi %c0_i32_20, %c1_i32_19 : i32
      %c0_i32_21 = arith.constant 0 : i32
      %38 = tpu.memref_slice %arg2[%36, %c0_i32_21] : memref<64x128xf32, #tpu.memory_space<any>> -> memref<1x128xf32, #tpu.memory_space<any>>
      %39 = tpu.memref_squeeze %38 : memref<1x128xf32, #tpu.memory_space<any>> -> memref<128xf32, #tpu.memory_space<any>>
      %c0_i32_22 = arith.constant 0 : i32
      %40 = tpu.memref_slice %arg5[%1, %37, %c0_i32_22] : memref<2x16x128xf32, #tpu.memory_space<vmem>> -> memref<1x1x128xf32, #tpu.memory_space<vmem>>
      %41 = tpu.memref_squeeze %40 : memref<1x1x128xf32, #tpu.memory_space<vmem>> -> memref<128xf32, #tpu.memory_space<vmem>>
      %42 = tpu.memref_slice %arg6[%1] : memref<2x!tpu.dma_semaphore, #tpu.memory_space<semaphore_mem>> -> memref<1x!tpu.dma_semaphore, #tpu.memory_space<semaphore_mem>>
      %43 = tpu.memref_squeeze %42 : memref<1x!tpu.dma_semaphore, #tpu.memory_space<semaphore_mem>> -> memref<!tpu.dma_semaphore, #tpu.memory_space<semaphore_mem>>
      tpu.enqueue_dma source(%39 : memref<128xf32, #tpu.memory_space<any>>) target(%41 : memref<128xf32, #tpu.memory_space<vmem>>) target_semaphore(%43 : memref<!tpu.dma_semaphore, #tpu.memory_space<semaphore_mem>>)
      %c2_i32_23 = arith.constant 2 : i32
      %44 = arith.addi %23, %c2_i32_23 : i32
      %45 = arith.index_cast %44 : i32 to index
      %46 = memref.load %arg1[%45] : memref<16xi32, #tpu.memory_space<smem>>
      %c0_i32_24 = arith.constant 0 : i32
      %47 = arith.addi %c0_i32_24, %c2_i32_23 : i32
      %c0_i32_25 = arith.constant 0 : i32
      %48 = tpu.memref_slice %arg2[%46, %c0_i32_25] : memref<64x128xf32, #tpu.memory_space<any>> -> memref<1x128xf32, #tpu.memory_space<any>>
      %49 = tpu.memref_squeeze %48 : memref<1x128xf32, #tpu.memory_space<any>> -> memref<128xf32, #tpu.memory_space<any>>
      %c0_i32_26 = arith.constant 0 : i32
      %50 = tpu.memref_slice %arg5[%1, %47, %c0_i32_26] : memref<2x16x128xf32, #tpu.memory_space<vmem>> -> memref<1x1x128xf32, #tpu.memory_space<vmem>>
      %51 = tpu.memref_squeeze %50 : memref<1x1x128xf32, #tpu.memory_space<vmem>> -> memref<128xf32, #tpu.memory_space<vmem>>
      %52 = tpu.memref_slice %arg6[%1] : memref<2x!tpu.dma_semaphore, #tpu.memory_space<semaphore_mem>> -> memref<1x!tpu.dma_semaphore, #tpu.memory_space<semaphore_mem>>
      %53 = tpu.memref_squeeze %52 : memref<1x!tpu.dma_semaphore, #tpu.memory_space<semaphore_mem>> -> memref<!tpu.dma_semaphore, #tpu.memory_space<semaphore_mem>>
      tpu.enqueue_dma source(%49 : memref<128xf32, #tpu.memory_space<any>>) target(%51 : memref<128xf32, #tpu.memory_space<vmem>>) target_semaphore(%53 : memref<!tpu.dma_semaphore, #tpu.memory_space<semaphore_mem>>)
      %c3_i32 = arith.constant 3 : i32
      %54 = arith.addi %23, %c3_i32 : i32
      %55 = arith.index_cast %54 : i32 to index
      %56 = memref.load %arg1[%55] : memref<16xi32, #tpu.memory_space<smem>>
      %c0_i32_27 = arith.constant 0 : i32
      %57 = arith.addi %c0_i32_27, %c3_i32 : i32
      %c0_i32_28 = arith.constant 0 : i32
      %58 = tpu.memref_slice %arg2[%56, %c0_i32_28] : memref<64x128xf32, #tpu.memory_space<any>> -> memref<1x128xf32, #tpu.memory_space<any>>
      %59 = tpu.memref_squeeze %58 : memref<1x128xf32, #tpu.memory_space<any>> -> memref<128xf32, #tpu.memory_space<any>>
      %c0_i32_29 = arith.constant 0 : i32
      %60 = tpu.memref_slice %arg5[%1, %57, %c0_i32_29] : memref<2x16x128xf32, #tpu.memory_space<vmem>> -> memref<1x1x128xf32, #tpu.memory_space<vmem>>
      %61 = tpu.memref_squeeze %60 : memref<1x1x128xf32, #tpu.memory_space<vmem>> -> memref<128xf32, #tpu.memory_space<vmem>>
      %62 = tpu.memref_slice %arg6[%1] : memref<2x!tpu.dma_semaphore, #tpu.memory_space<semaphore_mem>> -> memref<1x!tpu.dma_semaphore, #tpu.memory_space<semaphore_mem>>
      %63 = tpu.memref_squeeze %62 : memref<1x!tpu.dma_semaphore, #tpu.memory_space<semaphore_mem>> -> memref<!tpu.dma_semaphore, #tpu.memory_space<semaphore_mem>>
      tpu.enqueue_dma source(%59 : memref<128xf32, #tpu.memory_space<any>>) target(%61 : memref<128xf32, #tpu.memory_space<vmem>>) target_semaphore(%63 : memref<!tpu.dma_semaphore, #tpu.memory_space<semaphore_mem>>)
      %c4_i32 = arith.constant 4 : i32
      %64 = arith.addi %23, %c4_i32 : i32
      %65 = arith.index_cast %64 : i32 to index
      %66 = memref.load %arg1[%65] : memref<16xi32, #tpu.memory_space<smem>>
      %c0_i32_30 = arith.constant 0 : i32
      %67 = arith.addi %c0_i32_30, %c4_i32 : i32
      %c0_i32_31 = arith.constant 0 : i32
      %68 = tpu.memref_slice %arg2[%66, %c0_i32_31] : memref<64x128xf32, #tpu.memory_space<any>> -> memref<1x128xf32, #tpu.memory_space<any>>
      %69 = tpu.memref_squeeze %68 : memref<1x128xf32, #tpu.memory_space<any>> -> memref<128xf32, #tpu.memory_space<any>>
      %c0_i32_32 = arith.constant 0 : i32
      %70 = tpu.memref_slice %arg5[%1, %67, %c0_i32_32] : memref<2x16x128xf32, #tpu.memory_space<vmem>> -> memref<1x1x128xf32, #tpu.memory_space<vmem>>
      %71 = tpu.memref_squeeze %70 : memref<1x1x128xf32, #tpu.memory_space<vmem>> -> memref<128xf32, #tpu.memory_space<vmem>>
      %72 = tpu.memref_slice %arg6[%1] : memref<2x!tpu.dma_semaphore, #tpu.memory_space<semaphore_mem>> -> memref<1x!tpu.dma_semaphore, #tpu.memory_space<semaphore_mem>>
      %73 = tpu.memref_squeeze %72 : memref<1x!tpu.dma_semaphore, #tpu.memory_space<semaphore_mem>> -> memref<!tpu.dma_semaphore, #tpu.memory_space<semaphore_mem>>
      tpu.enqueue_dma source(%69 : memref<128xf32, #tpu.memory_space<any>>) target(%71 : memref<128xf32, #tpu.memory_space<vmem>>) target_semaphore(%73 : memref<!tpu.dma_semaphore, #tpu.memory_space<semaphore_mem>>)
      %c5_i32 = arith.constant 5 : i32
      %74 = arith.addi %23, %c5_i32 : i32
      %75 = arith.index_cast %74 : i32 to index
      %76 = memref.load %arg1[%75] : memref<16xi32, #tpu.memory_space<smem>>
      %c0_i32_33 = arith.constant 0 : i32
      %77 = arith.addi %c0_i32_33, %c5_i32 : i32
      %c0_i32_34 = arith.constant 0 : i32
      %78 = tpu.memref_slice %arg2[%76, %c0_i32_34] : memref<64x128xf32, #tpu.memory_space<any>> -> memref<1x128xf32, #tpu.memory_space<any>>
      %79 = tpu.memref_squeeze %78 : memref<1x128xf32, #tpu.memory_space<any>> -> memref<128xf32, #tpu.memory_space<any>>
      %c0_i32_35 = arith.constant 0 : i32
      %80 = tpu.memref_slice %arg5[%1, %77, %c0_i32_35] : memref<2x16x128xf32, #tpu.memory_space<vmem>> -> memref<1x1x128xf32, #tpu.memory_space<vmem>>
      %81 = tpu.memref_squeeze %80 : memref<1x1x128xf32, #tpu.memory_space<vmem>> -> memref<128xf32, #tpu.memory_space<vmem>>
      %82 = tpu.memref_slice %arg6[%1] : memref<2x!tpu.dma_semaphore, #tpu.memory_space<semaphore_mem>> -> memref<1x!tpu.dma_semaphore, #tpu.memory_space<semaphore_mem>>
      %83 = tpu.memref_squeeze %82 : memref<1x!tpu.dma_semaphore, #tpu.memory_space<semaphore_mem>> -> memref<!tpu.dma_semaphore, #tpu.memory_space<semaphore_mem>>
      tpu.enqueue_dma source(%79 : memref<128xf32, #tpu.memory_space<any>>) target(%81 : memref<128xf32, #tpu.memory_space<vmem>>) target_semaphore(%83 : memref<!tpu.dma_semaphore, #tpu.memory_space<semaphore_mem>>)
      %c6_i32 = arith.constant 6 : i32
      %84 = arith.addi %23, %c6_i32 : i32
      %85 = arith.index_cast %84 : i32 to index
      %86 = memref.load %arg1[%85] : memref<16xi32, #tpu.memory_space<smem>>
      %c0_i32_36 = arith.constant 0 : i32
      %87 = arith.addi %c0_i32_36, %c6_i32 : i32
      %c0_i32_37 = arith.constant 0 : i32
      %88 = tpu.memref_slice %arg2[%86, %c0_i32_37] : memref<64x128xf32, #tpu.memory_space<any>> -> memref<1x128xf32, #tpu.memory_space<any>>
      %89 = tpu.memref_squeeze %88 : memref<1x128xf32, #tpu.memory_space<any>> -> memref<128xf32, #tpu.memory_space<any>>
      %c0_i32_38 = arith.constant 0 : i32
      %90 = tpu.memref_slice %arg5[%1, %87, %c0_i32_38] : memref<2x16x128xf32, #tpu.memory_space<vmem>> -> memref<1x1x128xf32, #tpu.memory_space<vmem>>
      %91 = tpu.memref_squeeze %90 : memref<1x1x128xf32, #tpu.memory_space<vmem>> -> memref<128xf32, #tpu.memory_space<vmem>>
      %92 = tpu.memref_slice %arg6[%1] : memref<2x!tpu.dma_semaphore, #tpu.memory_space<semaphore_mem>> -> memref<1x!tpu.dma_semaphore, #tpu.memory_space<semaphore_mem>>
      %93 = tpu.memref_squeeze %92 : memref<1x!tpu.dma_semaphore, #tpu.memory_space<semaphore_mem>> -> memref<!tpu.dma_semaphore, #tpu.memory_space<semaphore_mem>>
      tpu.enqueue_dma source(%89 : memref<128xf32, #tpu.memory_space<any>>) target(%91 : memref<128xf32, #tpu.memory_space<vmem>>) target_semaphore(%93 : memref<!tpu.dma_semaphore, #tpu.memory_space<semaphore_mem>>)
      %c7_i32 = arith.constant 7 : i32
      %94 = arith.addi %23, %c7_i32 : i32
      %95 = arith.index_cast %94 : i32 to index
      %96 = memref.load %arg1[%95] : memref<16xi32, #tpu.memory_space<smem>>
      %c0_i32_39 = arith.constant 0 : i32
      %97 = arith.addi %c0_i32_39, %c7_i32 : i32
      %c0_i32_40 = arith.constant 0 : i32
      %98 = tpu.memref_slice %arg2[%96, %c0_i32_40] : memref<64x128xf32, #tpu.memory_space<any>> -> memref<1x128xf32, #tpu.memory_space<any>>
      %99 = tpu.memref_squeeze %98 : memref<1x128xf32, #tpu.memory_space<any>> -> memref<128xf32, #tpu.memory_space<any>>
      %c0_i32_41 = arith.constant 0 : i32
      %100 = tpu.memref_slice %arg5[%1, %97, %c0_i32_41] : memref<2x16x128xf32, #tpu.memory_space<vmem>> -> memref<1x1x128xf32, #tpu.memory_space<vmem>>
      %101 = tpu.memref_squeeze %100 : memref<1x1x128xf32, #tpu.memory_space<vmem>> -> memref<128xf32, #tpu.memory_space<vmem>>
      %102 = tpu.memref_slice %arg6[%1] : memref<2x!tpu.dma_semaphore, #tpu.memory_space<semaphore_mem>> -> memref<1x!tpu.dma_semaphore, #tpu.memory_space<semaphore_mem>>
      %103 = tpu.memref_squeeze %102 : memref<1x!tpu.dma_semaphore, #tpu.memory_space<semaphore_mem>> -> memref<!tpu.dma_semaphore, #tpu.memory_space<semaphore_mem>>
      tpu.enqueue_dma source(%99 : memref<128xf32, #tpu.memory_space<any>>) target(%101 : memref<128xf32, #tpu.memory_space<vmem>>) target_semaphore(%103 : memref<!tpu.dma_semaphore, #tpu.memory_space<semaphore_mem>>)
      %c8_i32 = arith.constant 8 : i32
      %c8_i32_42 = arith.constant 8 : i32
      %104 = arith.addi %22, %c8_i32_42 : i32
      %c0_i32_43 = arith.constant 0 : i32
      %105 = arith.addi %104, %c0_i32_43 : i32
      %106 = arith.index_cast %105 : i32 to index
      %107 = memref.load %arg1[%106] : memref<16xi32, #tpu.memory_space<smem>>
      %c8_i32_44 = arith.constant 8 : i32
      %108 = arith.addi %c8_i32_44, %c0_i32_43 : i32
      %c0_i32_45 = arith.constant 0 : i32
      %109 = tpu.memref_slice %arg2[%107, %c0_i32_45] : memref<64x128xf32, #tpu.memory_space<any>> -> memref<1x128xf32, #tpu.memory_space<any>>
      %110 = tpu.memref_squeeze %109 : memref<1x128xf32, #tpu.memory_space<any>> -> memref<128xf32, #tpu.memory_space<any>>
      %c0_i32_46 = arith.constant 0 : i32
      %111 = tpu.memref_slice %arg5[%1, %108, %c0_i32_46] : memref<2x16x128xf32, #tpu.memory_space<vmem>> -> memref<1x1x128xf32, #tpu.memory_space<vmem>>
      %112 = tpu.memref_squeeze %111 : memref<1x1x128xf32, #tpu.memory_space<vmem>> -> memref<128xf32, #tpu.memory_space<vmem>>
      %113 = tpu.memref_slice %arg6[%1] : memref<2x!tpu.dma_semaphore, #tpu.memory_space<semaphore_mem>> -> memref<1x!tpu.dma_semaphore, #tpu.memory_space<semaphore_mem>>
      %114 = tpu.memref_squeeze %113 : memref<1x!tpu.dma_semaphore, #tpu.memory_space<semaphore_mem>> -> memref<!tpu.dma_semaphore, #tpu.memory_space<semaphore_mem>>
      tpu.enqueue_dma source(%110 : memref<128xf32, #tpu.memory_space<any>>) target(%112 : memref<128xf32, #tpu.memory_space<vmem>>) target_semaphore(%114 : memref<!tpu.dma_semaphore, #tpu.memory_space<semaphore_mem>>)
      %c1_i32_47 = arith.constant 1 : i32
      %115 = arith.addi %104, %c1_i32_47 : i32
      %116 = arith.index_cast %115 : i32 to index
      %117 = memref.load %arg1[%116] : memref<16xi32, #tpu.memory_space<smem>>
      %c8_i32_48 = arith.constant 8 : i32
      %118 = arith.addi %c8_i32_48, %c1_i32_47 : i32
      %c0_i32_49 = arith.constant 0 : i32
      %119 = tpu.memref_slice %arg2[%117, %c0_i32_49] : memref<64x128xf32, #tpu.memory_space<any>> -> memref<1x128xf32, #tpu.memory_space<any>>
      %120 = tpu.memref_squeeze %119 : memref<1x128xf32, #tpu.memory_space<any>> -> memref<128xf32, #tpu.memory_space<any>>
      %c0_i32_50 = arith.constant 0 : i32
      %121 = tpu.memref_slice %arg5[%1, %118, %c0_i32_50] : memref<2x16x128xf32, #tpu.memory_space<vmem>> -> memref<1x1x128xf32, #tpu.memory_space<vmem>>
      %122 = tpu.memref_squeeze %121 : memref<1x1x128xf32, #tpu.memory_space<vmem>> -> memref<128xf32, #tpu.memory_space<vmem>>
      %123 = tpu.memref_slice %arg6[%1] : memref<2x!tpu.dma_semaphore, #tpu.memory_space<semaphore_mem>> -> memref<1x!tpu.dma_semaphore, #tpu.memory_space<semaphore_mem>>
      %124 = tpu.memref_squeeze %123 : memref<1x!tpu.dma_semaphore, #tpu.memory_space<semaphore_mem>> -> memref<!tpu.dma_semaphore, #tpu.memory_space<semaphore_mem>>
      tpu.enqueue_dma source(%120 : memref<128xf32, #tpu.memory_space<any>>) target(%122 : memref<128xf32, #tpu.memory_space<vmem>>) target_semaphore(%124 : memref<!tpu.dma_semaphore, #tpu.memory_space<semaphore_mem>>)
      %c2_i32_51 = arith.constant 2 : i32
      %125 = arith.addi %104, %c2_i32_51 : i32
      %126 = arith.index_cast %125 : i32 to index
      %127 = memref.load %arg1[%126] : memref<16xi32, #tpu.memory_space<smem>>
      %c8_i32_52 = arith.constant 8 : i32
      %128 = arith.addi %c8_i32_52, %c2_i32_51 : i32
      %c0_i32_53 = arith.constant 0 : i32
      %129 = tpu.memref_slice %arg2[%127, %c0_i32_53] : memref<64x128xf32, #tpu.memory_space<any>> -> memref<1x128xf32, #tpu.memory_space<any>>
      %130 = tpu.memref_squeeze %129 : memref<1x128xf32, #tpu.memory_space<any>> -> memref<128xf32, #tpu.memory_space<any>>
      %c0_i32_54 = arith.constant 0 : i32
      %131 = tpu.memref_slice %arg5[%1, %128, %c0_i32_54] : memref<2x16x128xf32, #tpu.memory_space<vmem>> -> memref<1x1x128xf32, #tpu.memory_space<vmem>>
      %132 = tpu.memref_squeeze %131 : memref<1x1x128xf32, #tpu.memory_space<vmem>> -> memref<128xf32, #tpu.memory_space<vmem>>
      %133 = tpu.memref_slice %arg6[%1] : memref<2x!tpu.dma_semaphore, #tpu.memory_space<semaphore_mem>> -> memref<1x!tpu.dma_semaphore, #tpu.memory_space<semaphore_mem>>
      %134 = tpu.memref_squeeze %133 : memref<1x!tpu.dma_semaphore, #tpu.memory_space<semaphore_mem>> -> memref<!tpu.dma_semaphore, #tpu.memory_space<semaphore_mem>>
      tpu.enqueue_dma source(%130 : memref<128xf32, #tpu.memory_space<any>>) target(%132 : memref<128xf32, #tpu.memory_space<vmem>>) target_semaphore(%134 : memref<!tpu.dma_semaphore, #tpu.memory_space<semaphore_mem>>)
      %c3_i32_55 = arith.constant 3 : i32
      %135 = arith.addi %104, %c3_i32_55 : i32
      %136 = arith.index_cast %135 : i32 to index
      %137 = memref.load %arg1[%136] : memref<16xi32, #tpu.memory_space<smem>>
      %c8_i32_56 = arith.constant 8 : i32
      %138 = arith.addi %c8_i32_56, %c3_i32_55 : i32
      %c0_i32_57 = arith.constant 0 : i32
      %139 = tpu.memref_slice %arg2[%137, %c0_i32_57] : memref<64x128xf32, #tpu.memory_space<any>> -> memref<1x128xf32, #tpu.memory_space<any>>
      %140 = tpu.memref_squeeze %139 : memref<1x128xf32, #tpu.memory_space<any>> -> memref<128xf32, #tpu.memory_space<any>>
      %c0_i32_58 = arith.constant 0 : i32
      %141 = tpu.memref_slice %arg5[%1, %138, %c0_i32_58] : memref<2x16x128xf32, #tpu.memory_space<vmem>> -> memref<1x1x128xf32, #tpu.memory_space<vmem>>
      %142 = tpu.memref_squeeze %141 : memref<1x1x128xf32, #tpu.memory_space<vmem>> -> memref<128xf32, #tpu.memory_space<vmem>>
      %143 = tpu.memref_slice %arg6[%1] : memref<2x!tpu.dma_semaphore, #tpu.memory_space<semaphore_mem>> -> memref<1x!tpu.dma_semaphore, #tpu.memory_space<semaphore_mem>>
      %144 = tpu.memref_squeeze %143 : memref<1x!tpu.dma_semaphore, #tpu.memory_space<semaphore_mem>> -> memref<!tpu.dma_semaphore, #tpu.memory_space<semaphore_mem>>
      tpu.enqueue_dma source(%140 : memref<128xf32, #tpu.memory_space<any>>) target(%142 : memref<128xf32, #tpu.memory_space<vmem>>) target_semaphore(%144 : memref<!tpu.dma_semaphore, #tpu.memory_space<semaphore_mem>>)
      %c4_i32_59 = arith.constant 4 : i32
      %145 = arith.addi %104, %c4_i32_59 : i32
      %146 = arith.index_cast %145 : i32 to index
      %147 = memref.load %arg1[%146] : memref<16xi32, #tpu.memory_space<smem>>
      %c8_i32_60 = arith.constant 8 : i32
      %148 = arith.addi %c8_i32_60, %c4_i32_59 : i32
      %c0_i32_61 = arith.constant 0 : i32
      %149 = tpu.memref_slice %arg2[%147, %c0_i32_61] : memref<64x128xf32, #tpu.memory_space<any>> -> memref<1x128xf32, #tpu.memory_space<any>>
      %150 = tpu.memref_squeeze %149 : memref<1x128xf32, #tpu.memory_space<any>> -> memref<128xf32, #tpu.memory_space<any>>
      %c0_i32_62 = arith.constant 0 : i32
      %151 = tpu.memref_slice %arg5[%1, %148, %c0_i32_62] : memref<2x16x128xf32, #tpu.memory_space<vmem>> -> memref<1x1x128xf32, #tpu.memory_space<vmem>>
      %152 = tpu.memref_squeeze %151 : memref<1x1x128xf32, #tpu.memory_space<vmem>> -> memref<128xf32, #tpu.memory_space<vmem>>
      %153 = tpu.memref_slice %arg6[%1] : memref<2x!tpu.dma_semaphore, #tpu.memory_space<semaphore_mem>> -> memref<1x!tpu.dma_semaphore, #tpu.memory_space<semaphore_mem>>
      %154 = tpu.memref_squeeze %153 : memref<1x!tpu.dma_semaphore, #tpu.memory_space<semaphore_mem>> -> memref<!tpu.dma_semaphore, #tpu.memory_space<semaphore_mem>>
      tpu.enqueue_dma source(%150 : memref<128xf32, #tpu.memory_space<any>>) target(%152 : memref<128xf32, #tpu.memory_space<vmem>>) target_semaphore(%154 : memref<!tpu.dma_semaphore, #tpu.memory_space<semaphore_mem>>)
      %c5_i32_63 = arith.constant 5 : i32
      %155 = arith.addi %104, %c5_i32_63 : i32
      %156 = arith.index_cast %155 : i32 to index
      %157 = memref.load %arg1[%156] : memref<16xi32, #tpu.memory_space<smem>>
      %c8_i32_64 = arith.constant 8 : i32
      %158 = arith.addi %c8_i32_64, %c5_i32_63 : i32
      %c0_i32_65 = arith.constant 0 : i32
      %159 = tpu.memref_slice %arg2[%157, %c0_i32_65] : memref<64x128xf32, #tpu.memory_space<any>> -> memref<1x128xf32, #tpu.memory_space<any>>
      %160 = tpu.memref_squeeze %159 : memref<1x128xf32, #tpu.memory_space<any>> -> memref<128xf32, #tpu.memory_space<any>>
      %c0_i32_66 = arith.constant 0 : i32
      %161 = tpu.memref_slice %arg5[%1, %158, %c0_i32_66] : memref<2x16x128xf32, #tpu.memory_space<vmem>> -> memref<1x1x128xf32, #tpu.memory_space<vmem>>
      %162 = tpu.memref_squeeze %161 : memref<1x1x128xf32, #tpu.memory_space<vmem>> -> memref<128xf32, #tpu.memory_space<vmem>>
      %163 = tpu.memref_slice %arg6[%1] : memref<2x!tpu.dma_semaphore, #tpu.memory_space<semaphore_mem>> -> memref<1x!tpu.dma_semaphore, #tpu.memory_space<semaphore_mem>>
      %164 = tpu.memref_squeeze %163 : memref<1x!tpu.dma_semaphore, #tpu.memory_space<semaphore_mem>> -> memref<!tpu.dma_semaphore, #tpu.memory_space<semaphore_mem>>
      tpu.enqueue_dma source(%160 : memref<128xf32, #tpu.memory_space<any>>) target(%162 : memref<128xf32, #tpu.memory_space<vmem>>) target_semaphore(%164 : memref<!tpu.dma_semaphore, #tpu.memory_space<semaphore_mem>>)
      %c6_i32_67 = arith.constant 6 : i32
      %165 = arith.addi %104, %c6_i32_67 : i32
      %166 = arith.index_cast %165 : i32 to index
      %167 = memref.load %arg1[%166] : memref<16xi32, #tpu.memory_space<smem>>
      %c8_i32_68 = arith.constant 8 : i32
      %168 = arith.addi %c8_i32_68, %c6_i32_67 : i32
      %c0_i32_69 = arith.constant 0 : i32
      %169 = tpu.memref_slice %arg2[%167, %c0_i32_69] : memref<64x128xf32, #tpu.memory_space<any>> -> memref<1x128xf32, #tpu.memory_space<any>>
      %170 = tpu.memref_squeeze %169 : memref<1x128xf32, #tpu.memory_space<any>> -> memref<128xf32, #tpu.memory_space<any>>
      %c0_i32_70 = arith.constant 0 : i32
      %171 = tpu.memref_slice %arg5[%1, %168, %c0_i32_70] : memref<2x16x128xf32, #tpu.memory_space<vmem>> -> memref<1x1x128xf32, #tpu.memory_space<vmem>>
      %172 = tpu.memref_squeeze %171 : memref<1x1x128xf32, #tpu.memory_space<vmem>> -> memref<128xf32, #tpu.memory_space<vmem>>
      %173 = tpu.memref_slice %arg6[%1] : memref<2x!tpu.dma_semaphore, #tpu.memory_space<semaphore_mem>> -> memref<1x!tpu.dma_semaphore, #tpu.memory_space<semaphore_mem>>
      %174 = tpu.memref_squeeze %173 : memref<1x!tpu.dma_semaphore, #tpu.memory_space<semaphore_mem>> -> memref<!tpu.dma_semaphore, #tpu.memory_space<semaphore_mem>>
      tpu.enqueue_dma source(%170 : memref<128xf32, #tpu.memory_space<any>>) target(%172 : memref<128xf32, #tpu.memory_space<vmem>>) target_semaphore(%174 : memref<!tpu.dma_semaphore, #tpu.memory_space<semaphore_mem>>)
      %c7_i32_71 = arith.constant 7 : i32
      %175 = arith.addi %104, %c7_i32_71 : i32
      %176 = arith.index_cast %175 : i32 to index
      %177 = memref.load %arg1[%176] : memref<16xi32, #tpu.memory_space<smem>>
      %c8_i32_72 = arith.constant 8 : i32
      %178 = arith.addi %c8_i32_72, %c7_i32_71 : i32
      %c0_i32_73 = arith.constant 0 : i32
      %179 = tpu.memref_slice %arg2[%177, %c0_i32_73] : memref<64x128xf32, #tpu.memory_space<any>> -> memref<1x128xf32, #tpu.memory_space<any>>
      %180 = tpu.memref_squeeze %179 : memref<1x128xf32, #tpu.memory_space<any>> -> memref<128xf32, #tpu.memory_space<any>>
      %c0_i32_74 = arith.constant 0 : i32
      %181 = tpu.memref_slice %arg5[%1, %178, %c0_i32_74] : memref<2x16x128xf32, #tpu.memory_space<vmem>> -> memref<1x1x128xf32, #tpu.memory_space<vmem>>
      %182 = tpu.memref_squeeze %181 : memref<1x1x128xf32, #tpu.memory_space<vmem>> -> memref<128xf32, #tpu.memory_space<vmem>>
      %183 = tpu.memref_slice %arg6[%1] : memref<2x!tpu.dma_semaphore, #tpu.memory_space<semaphore_mem>> -> memref<1x!tpu.dma_semaphore, #tpu.memory_space<semaphore_mem>>
      %184 = tpu.memref_squeeze %183 : memref<1x!tpu.dma_semaphore, #tpu.memory_space<semaphore_mem>> -> memref<!tpu.dma_semaphore, #tpu.memory_space<semaphore_mem>>
      tpu.enqueue_dma source(%180 : memref<128xf32, #tpu.memory_space<any>>) target(%182 : memref<128xf32, #tpu.memory_space<vmem>>) target_semaphore(%184 : memref<!tpu.dma_semaphore, #tpu.memory_space<semaphore_mem>>)
      %c8_i32_75 = arith.constant 8 : i32
    } else {
    }
    %c0_i32_4 = arith.constant 0 : i32
    %c0_i32_5 = arith.constant 0 : i32
    %9 = tpu.memref_slice %arg5[%1, %c0_i32_4, %c0_i32_5] : memref<2x16x128xf32, #tpu.memory_space<vmem>> -> memref<1x16x128xf32, #tpu.memory_space<vmem>>
    %10 = tpu.memref_squeeze %9 : memref<1x16x128xf32, #tpu.memory_space<vmem>> -> memref<16x128xf32, #tpu.memory_space<vmem>>
    %c0_i32_6 = arith.constant 0 : i32
    %c0_i32_7 = arith.constant 0 : i32
    %11 = tpu.memref_slice %arg5[%0, %c0_i32_6, %c0_i32_7] : memref<2x16x128xf32, #tpu.memory_space<vmem>> -> memref<1x16x128xf32, #tpu.memory_space<vmem>>
    %12 = tpu.memref_squeeze %11 : memref<1x16x128xf32, #tpu.memory_space<vmem>> -> memref<16x128xf32, #tpu.memory_space<vmem>>
    %13 = tpu.memref_slice %arg6[%0] : memref<2x!tpu.dma_semaphore, #tpu.memory_space<semaphore_mem>> -> memref<1x!tpu.dma_semaphore, #tpu.memory_space<semaphore_mem>>
    %14 = tpu.memref_squeeze %13 : memref<1x!tpu.dma_semaphore, #tpu.memory_space<semaphore_mem>> -> memref<!tpu.dma_semaphore, #tpu.memory_space<semaphore_mem>>
    tpu.wait_dma2 semaphore(%14 : memref<!tpu.dma_semaphore, #tpu.memory_space<semaphore_mem>>) src(%10 : memref<16x128xf32, #tpu.memory_space<vmem>>) dst(%12 : memref<16x128xf32, #tpu.memory_space<vmem>>)
    %15 = arith.index_cast %0 : i32 to index
    %c0 = arith.constant 0 : index
    %c0_8 = arith.constant 0 : index
    %16 = vector.load %arg5[%15, %c0, %c0_8] : memref<2x16x128xf32, #tpu.memory_space<vmem>>, vector<1x16x128xf32>
    %17 = vector.shape_cast %16 : vector<1x16x128xf32> to vector<16x128xf32>
    %c0_9 = arith.constant 0 : index
    %c0_10 = arith.constant 0 : index
    %18 = vector.load %arg3[%c0_9, %c0_10] : memref<16x128xf32, #tpu.memory_space<vmem>>, vector<16x128xf32>
    %19 = arith.addf %17, %18 : vector<16x128xf32>
    %c0_11 = arith.constant 0 : index
    %c0_12 = arith.constant 0 : index
    %20 = vector.load %arg4[%c0_11, %c0_12] : memref<16x128xf32, #tpu.memory_space<vmem>>, vector<16x128xf32>
    tpu.vector_store %arg4[%c0_11, %c0_12], %19 {strides = array<i32>} : memref<16x128xf32, #tpu.memory_space<vmem>>, vector<16x128xf32>,
    return
  }
  func.func @transform_1(%arg0: i32, %arg1: memref<16xi32, #tpu.memory_space<smem>>) -> (i32, i32) {
    %c0_i32 = arith.constant 0 : i32
    %c0_i32_0 = arith.constant 0 : i32
    %c0_i32_1 = arith.constant 0 : i32
    return %c0_i32, %c0_i32_0 : i32, i32
  }
  func.func @transform_2(%arg0: i32, %arg1: memref<16xi32, #tpu.memory_space<smem>>) -> (i32, i32) {
    %c0_i32 = arith.constant 0 : i32
    %c0_i32_0 = arith.constant 0 : i32
    return %arg0, %c0_i32 : i32, i32
  }
}

</mosaic_0001>

<llo_original>
// kernel: tpu_custom_call.1
$region0: #{tpu_custom_call.1}
  #allocation0 [shape = 'u32[]', space=smem, size = 0x4, offset = 0x4, fixed_abs, tag = 'smem constant byte address 0x4 - core index']
  #allocation1 [shape = 'u32[144,128]{1,0:T(1,128)}', space=vmem, size = 0x12000, scoped, tag = 'internal scratch']
  #allocation2 [shape = 'f32[2,16,128]{2,1,0:T(8,128)}', space=vmem, size = 0x4000, scoped, tag = 'scratch operand']
  #allocation3 [shape = 's32[2]{0}', space=sflag, size = 0x8, scoped, tag = 'scratch operand']
  #allocation4 [shape = 's32[1]{0}', space=sflag, size = 0x4, scoped, tag = 'scoped memory for tpu_custom_call.1']
  #allocation5 [shape = 'u8[512]{0}', space=smem, size = 0x200, scoped, tag = 'prefetched SMEM operand 0']
  #allocation10 [shape = 's32[]', space=sflag, size = 0x4, offset = 0, fixed_abs, tag = 'sflag constant byte address 0x0 - dummy sync flag']
  #allocation11 [shape = 's32[]', space=sflag, size = 0x4, offset = 0, fixed_abs, tag = 'sflag constant byte address 0x0 - dummy sync flag']
  #allocation12 [shape = 'u32[]', space=smem, size = 0x4, offset = 0x44, fixed_abs, tag = 'smem constant byte address 0x44 - assertion arg 0']
  #allocation13 [shape = 'u32[]', space=smem, size = 0x4, offset = 0x48, fixed_abs, tag = 'smem constant byte address 0x48 - assertion arg 1']
  #allocation14 [shape = 's32[]', space=sflag, size = 0x4, offset = 0, fixed_abs, tag = 'sflag constant byte address 0x0 - dummy sync flag']
  #allocation15 [shape = 's32[]', space=sflag, size = 0x4, offset = 0, fixed_abs, tag = 'sflag constant byte address 0x0 - dummy sync flag']
  #allocation16 [shape = 's32[]', space=sflag, size = 0x4, offset = 0, fixed_abs, tag = 'sflag constant byte address 0x0 - dummy sync flag']
  #allocation17 [shape = 's32[]', space=sflag, size = 0x4, offset = 0, fixed_abs, tag = 'sflag constant byte address 0x0 - dummy sync flag']
  #allocation18 [shape = 's32[]', space=sflag, size = 0x4, offset = 0, fixed_abs, tag = 'sflag constant byte address 0x0 - dummy sync flag']
  #allocation19 [shape = 's32[]', space=sflag, size = 0x4, offset = 0, fixed_abs, tag = 'sflag constant byte address 0x0 - dummy sync flag']
  #allocation20 [shape = 's32[]', space=sflag, size = 0x4, offset = 0, fixed_abs, tag = 'sflag constant byte address 0x0 - dummy sync flag']
  #allocation21 [shape = 's32[]', space=sflag, size = 0x4, offset = 0, fixed_abs, tag = 'sflag constant byte address 0x0 - dummy sync flag']
  #allocation22 [shape = 's32[]', space=sflag, size = 0x4, offset = 0, fixed_abs, tag = 'sflag constant byte address 0x0 - dummy sync flag']
  #allocation23 [shape = 's32[]', space=sflag, size = 0x4, offset = 0, fixed_abs, tag = 'sflag constant byte address 0x0 - dummy sync flag']
  #allocation24 [shape = 's32[]', space=sflag, size = 0x4, offset = 0, fixed_abs, tag = 'sflag constant byte address 0x0 - dummy sync flag']
  #allocation25 [shape = 's32[]', space=sflag, size = 0x4, offset = 0, fixed_abs, tag = 'sflag constant byte address 0x0 - dummy sync flag']
  #allocation26 [shape = 's32[]', space=sflag, size = 0x4, offset = 0, fixed_abs, tag = 'sflag constant byte address 0x0 - dummy sync flag']
  #allocation27 [shape = 's32[]', space=sflag, size = 0x4, offset = 0, fixed_abs, tag = 'sflag constant byte address 0x0 - dummy sync flag']
  #allocation28 [shape = 's32[]', space=sflag, size = 0x4, offset = 0, fixed_abs, tag = 'sflag constant byte address 0x0 - dummy sync flag']
  #allocation29 [shape = 's32[]', space=sflag, size = 0x4, offset = 0, fixed_abs, tag = 'sflag constant byte address 0x0 - dummy sync flag']
  #allocation30 [shape = 's32[]', space=sflag, size = 0x4, offset = 0, fixed_abs, tag = 'sflag constant byte address 0x0 - dummy sync flag']
  #allocation31 [shape = 's32[]', space=sflag, size = 0x4, offset = 0, fixed_abs, tag = 'sflag constant byte address 0x0 - dummy sync flag']
  #allocation32 [shape = 's32[]', space=sflag, size = 0x4, offset = 0, fixed_abs, tag = 'sflag constant byte address 0x0 - dummy sync flag']
  #allocation33 [shape = 's32[]', space=sflag, size = 0x4, offset = 0, fixed_abs, tag = 'sflag constant byte address 0x0 - dummy sync flag']
  #allocation34 [shape = 's32[]', space=sflag, size = 0x4, offset = 0, fixed_abs, tag = 'sflag constant byte address 0x0 - dummy sync flag']
  #allocation35 [shape = 's32[]', space=sflag, size = 0x4, offset = 0, fixed_abs, tag = 'sflag constant byte address 0x0 - dummy sync flag']
  #allocation36 [shape = 's32[]', space=sflag, size = 0x4, offset = 0, fixed_abs, tag = 'sflag constant byte address 0x0 - dummy sync flag']
  #allocation37 [shape = 's32[]', space=sflag, size = 0x4, offset = 0, fixed_abs, tag = 'sflag constant byte address 0x0 - dummy sync flag']
  #allocation38 [shape = 's32[]', space=sflag, size = 0x4, offset = 0, fixed_abs, tag = 'sflag constant byte address 0x0 - dummy sync flag']
  #allocation39 [shape = 's32[]', space=sflag, size = 0x4, offset = 0, fixed_abs, tag = 'sflag constant byte address 0x0 - dummy sync flag']
  #allocation40 [shape = 's32[]', space=sflag, size = 0x4, offset = 0, fixed_abs, tag = 'sflag constant byte address 0x0 - dummy sync flag']
  #allocation41 [shape = 's32[]', space=sflag, size = 0x4, offset = 0, fixed_abs, tag = 'sflag constant byte address 0x0 - dummy sync flag']
  #allocation42 [shape = 's32[]', space=sflag, size = 0x4, offset = 0, fixed_abs, tag = 'sflag constant byte address 0x0 - dummy sync flag']
  #allocation43 [shape = 's32[]', space=sflag, size = 0x4, offset = 0, fixed_abs, tag = 'sflag constant byte address 0x0 - dummy sync flag']
  #allocation44 [shape = 's32[]', space=sflag, size = 0x4, offset = 0, fixed_abs, tag = 'sflag constant byte address 0x0 - dummy sync flag']
  #allocation45 [shape = 's32[]', space=sflag, size = 0x4, offset = 0, fixed_abs, tag = 'sflag constant byte address 0x0 - dummy sync flag']
  #allocation46 [shape = 's32[]', space=sflag, size = 0x4, offset = 0, fixed_abs, tag = 'sflag constant byte address 0x0 - dummy sync flag']
  #allocation47 [shape = 's32[]', space=sflag, size = 0x4, offset = 0, fixed_abs, tag = 'sflag constant byte address 0x0 - dummy sync flag']
  #allocation48 [shape = 's32[]', space=sflag, size = 0x4, offset = 0, fixed_abs, tag = 'sflag constant byte address 0x0 - dummy sync flag']
  #allocation49 [shape = 's32[]', space=sflag, size = 0x4, offset = 0, fixed_abs, tag = 'sflag constant byte address 0x0 - dummy sync flag']
  #allocation50 [shape = 's32[]', space=sflag, size = 0x4, offset = 0, fixed_abs, tag = 'sflag constant byte address 0x0 - dummy sync flag']
  #allocation51 [shape = 's32[]', space=sflag, size = 0x4, offset = 0, fixed_abs, tag = 'sflag constant byte address 0x0 - dummy sync flag']
  #allocation52 [shape = 's32[]', space=sflag, size = 0x4, offset = 0, fixed_abs, tag = 'sflag constant byte address 0x0 - dummy sync flag']
  #allocation53 [shape = 's32[]', space=sflag, size = 0x4, offset = 0, fixed_abs, tag = 'sflag constant byte address 0x0 - dummy sync flag']
  #allocation54 [shape = 's32[]', space=sflag, size = 0x4, offset = 0, fixed_abs, tag = 'sflag constant byte address 0x0 - dummy sync flag']
  #allocation55 [shape = 's32[]', space=sflag, size = 0x4, offset = 0, fixed_abs, tag = 'sflag constant byte address 0x0 - dummy sync flag']
  #allocation56 [shape = 's32[]', space=sflag, size = 0x4, offset = 0, fixed_abs, tag = 'sflag constant byte address 0x0 - dummy sync flag']
  #allocation57 [shape = 's32[]', space=sflag, size = 0x4, offset = 0, fixed_abs, tag = 'sflag constant byte address 0x0 - dummy sync flag']
  #allocation58 [shape = 's32[]', space=sflag, size = 0x4, offset = 0, fixed_abs, tag = 'sflag constant byte address 0x0 - dummy sync flag']
  #allocation59 [shape = 's32[]', space=sflag, size = 0x4, offset = 0, fixed_abs, tag = 'sflag constant byte address 0x0 - dummy sync flag']
  #allocation60 [shape = 's32[]', space=sflag, size = 0x4, offset = 0, fixed_abs, tag = 'sflag constant byte address 0x0 - dummy sync flag']
  #allocation61 [shape = 's32[]', space=sflag, size = 0x4, offset = 0, fixed_abs, tag = 'sflag constant byte address 0x0 - dummy sync flag']
  #allocation62 [shape = 's32[]', space=sflag, size = 0x4, offset = 0, fixed_abs, tag = 'sflag constant byte address 0x0 - dummy sync flag']
  #allocation63 [shape = 's32[]', space=sflag, size = 0x4, offset = 0, fixed_abs, tag = 'sflag constant byte address 0x0 - dummy sync flag']
  #allocation64 [shape = 's32[]', space=sflag, size = 0x4, offset = 0, fixed_abs, tag = 'sflag constant byte address 0x0 - dummy sync flag']
  #allocation65 [shape = 's32[]', space=sflag, size = 0x4, offset = 0, fixed_abs, tag = 'sflag constant byte address 0x0 - dummy sync flag']
  #allocation66 [shape = 's32[]', space=sflag, size = 0x4, offset = 0, fixed_abs, tag = 'sflag constant byte address 0x0 - dummy sync flag']
  #allocation67 [shape = 's32[]', space=sflag, size = 0x4, offset = 0, fixed_abs, tag = 'sflag constant byte address 0x0 - dummy sync flag']
  #allocation68 [shape = 's32[]', space=sflag, size = 0x4, offset = 0, fixed_abs, tag = 'sflag constant byte address 0x0 - dummy sync flag']
  #allocation69 [shape = 's32[]', space=sflag, size = 0x4, offset = 0, fixed_abs, tag = 'sflag constant byte address 0x0 - dummy sync flag']
  #allocation70 [shape = 's32[]', space=sflag, size = 0x4, offset = 0, fixed_abs, tag = 'sflag constant byte address 0x0 - dummy sync flag']
  #allocation71 [shape = 's32[]', space=sflag, size = 0x4, offset = 0, fixed_abs, tag = 'sflag constant byte address 0x0 - dummy sync flag']
  #allocation72 [shape = 's32[]', space=sflag, size = 0x4, offset = 0, fixed_abs, tag = 'sflag constant byte address 0x0 - dummy sync flag']
  #allocation73 [shape = 's32[]', space=sflag, size = 0x4, offset = 0, fixed_abs, tag = 'sflag constant byte address 0x0 - dummy sync flag']
  #allocation74 [shape = 's32[]', space=sflag, size = 0x4, offset = 0, fixed_abs, tag = 'sflag constant byte address 0x0 - dummy sync flag']
  #allocation75 [shape = 's32[]', space=sflag, size = 0x4, offset = 0, fixed_abs, tag = 'sflag constant byte address 0x0 - dummy sync flag']
  %s0 = inlined_call_operand.hbm [shape: s32[16], index: 0, kind: input, shape index: {}]
  %s1 = inlined_call_operand.hbm [shape: f32[64,128], index: 1, kind: input, shape index: {}]
  %s2 = inlined_call_operand.hbm [shape: f32[16,128], index: 2, kind: input, shape index: {}]
  %s3 = inlined_call_operand.hbm [shape: f32[16,128], index: 3, kind: output, shape index: {}]
  %s4 = sld [smem:[#allocation0]]
  $region154: #{tpu_custom_call.1} parent=0
    _
  %s6 = ssub.s32 1, %s4
  %s7 = scalar_select 0, %s6, %s4
  %9 = dma.hbm_to_smem %s0, 16, [#allocation5], [#allocation4]
  %10 = dma.done [#allocation4], 16
  %11 = sfence
  $region1: #{tpu_custom_call.1} parent=0
    #allocation6 [shape = 'u8[8192]{0}', space=vmem, size = 0x2000, scoped, tag = 'input window, operand 2, single buffered']
    #allocation7 [shape = 's32[1]{0}', space=sflag, size = 0x4, scoped, tag = 'scoped memory for tpu_custom_call.1']
    #allocation8 [shape = 's32[1]{0}', space=sflag, size = 0x4, scoped, tag = 'scoped memory for tpu_custom_call.1']
    #allocation9 [shape = 'u8[8192]{0}', space=vmem, size = 0x2000, scoped, tag = 'output window, operand 0, single buffered']
    %12 = vsyncpa [#allocation7], 0
    %13 = vsyncpa [#allocation8], 0
    // Predicated region
    $region2: #{tpu_custom_call.1} parent=1 // pred_check
      _
    $region3: #{tpu_custom_call.1} parent=1 // pred_check_branch
      %15 = sbr.rel (0) target = $region5
    $region4: #{tpu_custom_call.1} parent=1 // pred_region
      %s17 = ssub.s32 256, 256
      %18 = vsyncadd [#allocation7], %s17
      %s19 = sshll.u32 [#allocation6], 4
      %s20 = int_to_ptr.vmem [resolvable:$true] %s19
      %25 = dma.hbm_to_vmem [thread:$0]  %s2, 256, %s20, [#allocation7], 128, 128, 8
    $region5: #{tpu_custom_call.1} parent=1 // pred_fallthru
      _
    // Predicated region
    $region6: #{tpu_custom_call.1} parent=1 // pred_check
      _
    $region7: #{tpu_custom_call.1} parent=1 // pred_check_branch
      %27 = sbr.rel (0) target = $region9
    $region8: #{tpu_custom_call.1} parent=1 // pred_region
      %28 = dma.done [#allocation7], 256
    $region9: #{tpu_custom_call.1} parent=1 // pred_fallthru
      _
    %s29 = ssub.s32 0, 0
    %s30 = ssub.s32 0, 0
    %s31 = ssub.s32 1, 0
    %p32 = scmp.eq.s32.totalorder 0, 0
    // Predicated region
    $region10: #{tpu_custom_call.1} parent=1 // pred_check
      %p33 = pneg %p32
    $region11: #{tpu_custom_call.1} parent=1 // pred_check_branch
      %35 = sbr.rel (%p33) target = $region13
    $region12: #{tpu_custom_call.1} parent=1 // pred_region
      %s36 = smul.u32 0, 16
      %s37 = sld [smem:[#allocation5 + %s36]]
      %s38 = smul.addr %s37, 16
      %s39 = scalar_lea.hbm %s1, %s38
      %s40 = smul.u32 0, 16
      %s41 = scalar_lea.vmem [#allocation2], %s40
      // Predicated region
      $region14: #{tpu_custom_call.1} parent=12 // pred_check
        _
      $region15: #{tpu_custom_call.1} parent=12 // pred_check_branch
        %43 = sbr.rel target = $region17
      $region16: #{tpu_custom_call.1} parent=12 // pred_region
        %44 = sst [smem:[#allocation12]] [#allocation11]
        %45 = sst [smem:[#allocation13]] [#allocation10]
      $region17: #{tpu_custom_call.1} parent=12 // pred_fallthru
        _
      %47 = shalt.err (0)
      %s49 = sshll.u32 %s41, 4
      %s50 = int_to_ptr.vmem [resolvable:$true] %s49
      %52 = dma.hbm_to_vmem [thread:$0]  %s39, 16, %s50, [#allocation3]
      %s53 = sadd.s32 %s36, 1
      %s54 = sld [smem:[#allocation5 + %s53]]
      %s55 = smul.addr %s54, 16
      %s56 = scalar_lea.hbm %s1, %s55
      %s57 = sadd.s32 1, %s40
      %s58 = scalar_lea.vmem [#allocation2], %s57
      // Predicated region
      $region18: #{tpu_custom_call.1} parent=12 // pred_check
        _
      $region19: #{tpu_custom_call.1} parent=12 // pred_check_branch
        %60 = sbr.rel target = $region21
      $region20: #{tpu_custom_call.1} parent=12 // pred_region
        %61 = sst [smem:[#allocation12]] [#allocation15]
        %62 = sst [smem:[#allocation13]] [#allocation14]
      $region21: #{tpu_custom_call.1} parent=12 // pred_fallthru
        _
      %64 = shalt.err (0)
      %s66 = sshll.u32 %s58, 4
      %s67 = int_to_ptr.vmem [resolvable:$true] %s66
      %69 = dma.hbm_to_vmem [thread:$0]  %s56, 16, %s67, [#allocation3]
      %s70 = sadd.s32 %s36, 2
      %s71 = sld [smem:[#allocation5 + %s70]]
      %s72 = smul.addr %s71, 16
      %s73 = scalar_lea.hbm %s1, %s72
      %s74 = sadd.s32 2, %s40
      %s75 = scalar_lea.vmem [#allocation2], %s74
      // Predicated region
      $region22: #{tpu_custom_call.1} parent=12 // pred_check
        _
      $region23: #{tpu_custom_call.1} parent=12 // pred_check_branch
        %77 = sbr.rel target = $region25
      $region24: #{tpu_custom_call.1} parent=12 // pred_region
        %78 = sst [smem:[#allocation12]] [#allocation17]
        %79 = sst [smem:[#allocation13]] [#allocation16]
      $region25: #{tpu_custom_call.1} parent=12 // pred_fallthru
        _
      %81 = shalt.err (0)
      %s83 = sshll.u32 %s75, 4
      %s84 = int_to_ptr.vmem [resolvable:$true] %s83
      %86 = dma.hbm_to_vmem [thread:$0]  %s73, 16, %s84, [#allocation3]
      %s87 = sadd.s32 %s36, 3
      %s88 = sld [smem:[#allocation5 + %s87]]
      %s89 = smul.addr %s88, 16
      %s90 = scalar_lea.hbm %s1, %s89
      %s91 = sadd.s32 3, %s40
      %s92 = scalar_lea.vmem [#allocation2], %s91
      // Predicated region
      $region26: #{tpu_custom_call.1} parent=12 // pred_check
        _
      $region27: #{tpu_custom_call.1} parent=12 // pred_check_branch
        %94 = sbr.rel target = $region29
      $region28: #{tpu_custom_call.1} parent=12 // pred_region
        %95 = sst [smem:[#allocation12]] [#allocation19]
        %96 = sst [smem:[#allocation13]] [#allocation18]
      $region29: #{tpu_custom_call.1} parent=12 // pred_fallthru
        _
      %98 = shalt.err (0)
      %s100 = sshll.u32 %s92, 4
      %s101 = int_to_ptr.vmem [resolvable:$true] %s100
      %103 = dma.hbm_to_vmem [thread:$0]  %s90, 16, %s101, [#allocation3]
      %s104 = sadd.s32 %s36, 4
      %s105 = sld [smem:[#allocation5 + %s104]]
      %s106 = smul.addr %s105, 16
      %s107 = scalar_lea.hbm %s1, %s106
      %s108 = sadd.s32 4, %s40
      %s109 = scalar_lea.vmem [#allocation2], %s108
      // Predicated region
      $region30: #{tpu_custom_call.1} parent=12 // pred_check
        _
      $region31: #{tpu_custom_call.1} parent=12 // pred_check_branch
        %111 = sbr.rel target = $region33
      $region32: #{tpu_custom_call.1} parent=12 // pred_region
        %112 = sst [smem:[#allocation12]] [#allocation21]
        %113 = sst [smem:[#allocation13]] [#allocation20]
      $region33: #{tpu_custom_call.1} parent=12 // pred_fallthru
        _
      %115 = shalt.err (0)
      %s117 = sshll.u32 %s109, 4
      %s118 = int_to_ptr.vmem [resolvable:$true] %s117
      %120 = dma.hbm_to_vmem [thread:$0]  %s107, 16, %s118, [#allocation3]
      %s121 = sadd.s32 %s36, 5
      %s122 = sld [smem:[#allocation5 + %s121]]
      %s123 = smul.addr %s122, 16
      %s124 = scalar_lea.hbm %s1, %s123
      %s125 = sadd.s32 5, %s40
      %s126 = scalar_lea.vmem [#allocation2], %s125
      // Predicated region
      $region34: #{tpu_custom_call.1} parent=12 // pred_check
        _
      $region35: #{tpu_custom_call.1} parent=12 // pred_check_branch
        %128 = sbr.rel target = $region37
      $region36: #{tpu_custom_call.1} parent=12 // pred_region
        %129 = sst [smem:[#allocation12]] [#allocation23]
        %130 = sst [smem:[#allocation13]] [#allocation22]
      $region37: #{tpu_custom_call.1} parent=12 // pred_fallthru
        _
      %132 = shalt.err (0)
      %s134 = sshll.u32 %s126, 4
      %s135 = int_to_ptr.vmem [resolvable:$true] %s134
      %137 = dma.hbm_to_vmem [thread:$0]  %s124, 16, %s135, [#allocation3]
      %s138 = sadd.s32 %s36, 6
      %s139 = sld [smem:[#allocation5 + %s138]]
      %s140 = smul.addr %s139, 16
      %s141 = scalar_lea.hbm %s1, %s140
      %s142 = sadd.s32 6, %s40
      %s143 = scalar_lea.vmem [#allocation2], %s142
      // Predicated region
      $region38: #{tpu_custom_call.1} parent=12 // pred_check
        _
      $region39: #{tpu_custom_call.1} parent=12 // pred_check_branch
        %145 = sbr.rel target = $region41
      $region40: #{tpu_custom_call.1} parent=12 // pred_region
        %146 = sst [smem:[#allocation12]] [#allocation25]
        %147 = sst [smem:[#allocation13]] [#allocation24]
      $region41: #{tpu_custom_call.1} parent=12 // pred_fallthru
        _
      %149 = shalt.err (0)
      %s151 = sshll.u32 %s143, 4
      %s152 = int_to_ptr.vmem [resolvable:$true] %s151
      %154 = dma.hbm_to_vmem [thread:$0]  %s141, 16, %s152, [#allocation3]
      %s155 = sadd.s32 %s36, 7
      %s156 = sld [smem:[#allocation5 + %s155]]
      %s157 = smul.addr %s156, 16
      %s158 = scalar_lea.hbm %s1, %s157
      %s159 = sadd.s32 7, %s40
      %s160 = scalar_lea.vmem [#allocation2], %s159
      // Predicated region
      $region42: #{tpu_custom_call.1} parent=12 // pred_check
        _
      $region43: #{tpu_custom_call.1} parent=12 // pred_check_branch
        %162 = sbr.rel target = $region45
      $region44: #{tpu_custom_call.1} parent=12 // pred_region
        %163 = sst [smem:[#allocation12]] [#allocation27]
        %164 = sst [smem:[#allocation13]] [#allocation26]
      $region45: #{tpu_custom_call.1} parent=12 // pred_fallthru
        _
      %166 = shalt.err (0)
      %s168 = sshll.u32 %s160, 4
      %s169 = int_to_ptr.vmem [resolvable:$true] %s168
      %171 = dma.hbm_to_vmem [thread:$0]  %s158, 16, %s169, [#allocation3]
      %s172 = sadd.s32 %s36, 8
      %s173 = sld [smem:[#allocation5 + %s172]]
      %s174 = smul.addr %s173, 16
      %s175 = scalar_lea.hbm %s1, %s174
      %s176 = sadd.s32 8, %s40
      %s177 = scalar_lea.vmem [#allocation2], %s176
      // Predicated region
      $region46: #{tpu_custom_call.1} parent=12 // pred_check
        _
      $region47: #{tpu_custom_call.1} parent=12 // pred_check_branch
        %179 = sbr.rel target = $region49
      $region48: #{tpu_custom_call.1} parent=12 // pred_region
        %180 = sst [smem:[#allocation12]] [#allocation29]
        %181 = sst [smem:[#allocation13]] [#allocation28]
      $region49: #{tpu_custom_call.1} parent=12 // pred_fallthru
        _
      %183 = shalt.err (0)
      %s185 = sshll.u32 %s177, 4
      %s186 = int_to_ptr.vmem [resolvable:$true] %s185
      %188 = dma.hbm_to_vmem [thread:$0]  %s175, 16, %s186, [#allocation3]
      %s189 = sadd.s32 %s36, 9
      %s190 = sld [smem:[#allocation5 + %s189]]
      %s191 = smul.addr %s190, 16
      %s192 = scalar_lea.hbm %s1, %s191
      %s193 = sadd.s32 9, %s40
      %s194 = scalar_lea.vmem [#allocation2], %s193
      // Predicated region
      $region50: #{tpu_custom_call.1} parent=12 // pred_check
        _
      $region51: #{tpu_custom_call.1} parent=12 // pred_check_branch
        %196 = sbr.rel target = $region53
      $region52: #{tpu_custom_call.1} parent=12 // pred_region
        %197 = sst [smem:[#allocation12]] [#allocation31]
        %198 = sst [smem:[#allocation13]] [#allocation30]
      $region53: #{tpu_custom_call.1} parent=12 // pred_fallthru
        _
      %200 = shalt.err (0)
      %s202 = sshll.u32 %s194, 4
      %s203 = int_to_ptr.vmem [resolvable:$true] %s202
      %205 = dma.hbm_to_vmem [thread:$0]  %s192, 16, %s203, [#allocation3]
      %s206 = sadd.s32 %s36, 10
      %s207 = sld [smem:[#allocation5 + %s206]]
      %s208 = smul.addr %s207, 16
      %s209 = scalar_lea.hbm %s1, %s208
      %s210 = sadd.s32 10, %s40
      %s211 = scalar_lea.vmem [#allocation2], %s210
      // Predicated region
      $region54: #{tpu_custom_call.1} parent=12 // pred_check
        _
      $region55: #{tpu_custom_call.1} parent=12 // pred_check_branch
        %213 = sbr.rel target = $region57
      $region56: #{tpu_custom_call.1} parent=12 // pred_region
        %214 = sst [smem:[#allocation12]] [#allocation33]
        %215 = sst [smem:[#allocation13]] [#allocation32]
      $region57: #{tpu_custom_call.1} parent=12 // pred_fallthru
        _
      %217 = shalt.err (0)
      %s219 = sshll.u32 %s211, 4
      %s220 = int_to_ptr.vmem [resolvable:$true] %s219
      %222 = dma.hbm_to_vmem [thread:$0]  %s209, 16, %s220, [#allocation3]
      %s223 = sadd.s32 %s36, 11
      %s224 = sld [smem:[#allocation5 + %s223]]
      %s225 = smul.addr %s224, 16
      %s226 = scalar_lea.hbm %s1, %s225
      %s227 = sadd.s32 11, %s40
      %s228 = scalar_lea.vmem [#allocation2], %s227
      // Predicated region
      $region58: #{tpu_custom_call.1} parent=12 // pred_check
        _
      $region59: #{tpu_custom_call.1} parent=12 // pred_check_branch
        %230 = sbr.rel target = $region61
      $region60: #{tpu_custom_call.1} parent=12 // pred_region
        %231 = sst [smem:[#allocation12]] [#allocation35]
        %232 = sst [smem:[#allocation13]] [#allocation34]
      $region61: #{tpu_custom_call.1} parent=12 // pred_fallthru
        _
      %234 = shalt.err (0)
      %s236 = sshll.u32 %s228, 4
      %s237 = int_to_ptr.vmem [resolvable:$true] %s236
      %239 = dma.hbm_to_vmem [thread:$0]  %s226, 16, %s237, [#allocation3]
      %s240 = sadd.s32 %s36, 12
      %s241 = sld [smem:[#allocation5 + %s240]]
      %s242 = smul.addr %s241, 16
      %s243 = scalar_lea.hbm %s1, %s242
      %s244 = sadd.s32 12, %s40
      %s245 = scalar_lea.vmem [#allocation2], %s244
      // Predicated region
      $region62: #{tpu_custom_call.1} parent=12 // pred_check
        _
      $region63: #{tpu_custom_call.1} parent=12 // pred_check_branch
        %247 = sbr.rel target = $region65
      $region64: #{tpu_custom_call.1} parent=12 // pred_region
        %248 = sst [smem:[#allocation12]] [#allocation37]
        %249 = sst [smem:[#allocation13]] [#allocation36]
      $region65: #{tpu_custom_call.1} parent=12 // pred_fallthru
        _
      %251 = shalt.err (0)
      %s253 = sshll.u32 %s245, 4
      %s254 = int_to_ptr.vmem [resolvable:$true] %s253
      %256 = dma.hbm_to_vmem [thread:$0]  %s243, 16, %s254, [#allocation3]
      %s257 = sadd.s32 %s36, 13
      %s258 = sld [smem:[#allocation5 + %s257]]
      %s259 = smul.addr %s258, 16
      %s260 = scalar_lea.hbm %s1, %s259
      %s261 = sadd.s32 13, %s40
      %s262 = scalar_lea.vmem [#allocation2], %s261
      // Predicated region
      $region66: #{tpu_custom_call.1} parent=12 // pred_check
        _
      $region67: #{tpu_custom_call.1} parent=12 // pred_check_branch
        %264 = sbr.rel target = $region69
      $region68: #{tpu_custom_call.1} parent=12 // pred_region
        %265 = sst [smem:[#allocation12]] [#allocation39]
        %266 = sst [smem:[#allocation13]] [#allocation38]
      $region69: #{tpu_custom_call.1} parent=12 // pred_fallthru
        _
      %268 = shalt.err (0)
      %s270 = sshll.u32 %s262, 4
      %s271 = int_to_ptr.vmem [resolvable:$true] %s270
      %273 = dma.hbm_to_vmem [thread:$0]  %s260, 16, %s271, [#allocation3]
      %s274 = sadd.s32 %s36, 14
      %s275 = sld [smem:[#allocation5 + %s274]]
      %s276 = smul.addr %s275, 16
      %s277 = scalar_lea.hbm %s1, %s276
      %s278 = sadd.s32 14, %s40
      %s279 = scalar_lea.vmem [#allocation2], %s278
      // Predicated region
      $region70: #{tpu_custom_call.1} parent=12 // pred_check
        _
      $region71: #{tpu_custom_call.1} parent=12 // pred_check_branch
        %281 = sbr.rel target = $region73
      $region72: #{tpu_custom_call.1} parent=12 // pred_region
        %282 = sst [smem:[#allocation12]] [#allocation41]
        %283 = sst [smem:[#allocation13]] [#allocation40]
      $region73: #{tpu_custom_call.1} parent=12 // pred_fallthru
        _
      %285 = shalt.err (0)
      %s287 = sshll.u32 %s279, 4
      %s288 = int_to_ptr.vmem [resolvable:$true] %s287
      %290 = dma.hbm_to_vmem [thread:$0]  %s277, 16, %s288, [#allocation3]
      %s291 = sadd.s32 %s36, 15
      %s292 = sld [smem:[#allocation5 + %s291]]
      %s293 = smul.addr %s292, 16
      %s294 = scalar_lea.hbm %s1, %s293
      %s295 = sadd.s32 15, %s40
      %s296 = scalar_lea.vmem [#allocation2], %s295
      // Predicated region
      $region74: #{tpu_custom_call.1} parent=12 // pred_check
        _
      $region75: #{tpu_custom_call.1} parent=12 // pred_check_branch
        %298 = sbr.rel target = $region77
      $region76: #{tpu_custom_call.1} parent=12 // pred_region
        %299 = sst [smem:[#allocation12]] [#allocation43]
        %300 = sst [smem:[#allocation13]] [#allocation42]
      $region77: #{tpu_custom_call.1} parent=12 // pred_fallthru
        _
      %302 = shalt.err (0)
      %s304 = sshll.u32 %s296, 4
      %s305 = int_to_ptr.vmem [resolvable:$true] %s304
      %307 = dma.hbm_to_vmem [thread:$0]  %s294, 16, %s305, [#allocation3]
    $region13: #{tpu_custom_call.1} parent=1 // pred_fallthru
      _
    %s308 = sadd.s32 0, 1
    %p309 = scmp.lt.s32.totalorder %s308, 1
    // Predicated region
    $region78: #{tpu_custom_call.1} parent=1 // pred_check
      %p310 = pneg %p309
    $region79: #{tpu_custom_call.1} parent=1 // pred_check_branch
      %312 = sbr.rel (%p310) target = $region81
    $region80: #{tpu_custom_call.1} parent=1 // pred_region
      %s313 = smul.u32 %s308, 16
      %s314 = sld [smem:[#allocation5 + %s313]]
      %s315 = smul.addr %s314, 16
      %s316 = scalar_lea.hbm %s1, %s315
      %s317 = smul.u32 %s31, 16
      %s318 = scalar_lea.vmem [#allocation2], %s317
      %s319 = scalar_lea.sflag [#allocation3], %s31
      // Predicated region
      $region82: #{tpu_custom_call.1} parent=80 // pred_check
        _
      $region83: #{tpu_custom_call.1} parent=80 // pred_check_branch
        %321 = sbr.rel target = $region85
      $region84: #{tpu_custom_call.1} parent=80 // pred_region
        %322 = sst [smem:[#allocation12]] [#allocation45]
        %323 = sst [smem:[#allocation13]] [#allocation44]
      $region85: #{tpu_custom_call.1} parent=80 // pred_fallthru
        _
      %325 = shalt.err (0)
      %s327 = sshll.u32 %s318, 4
      %s328 = int_to_ptr.vmem [resolvable:$true] %s327
      %330 = dma.hbm_to_vmem [thread:$0]  %s316, 16, %s328, %s319
      %s331 = sadd.s32 %s313, 1
      %s332 = sld [smem:[#allocation5 + %s331]]
      %s333 = smul.addr %s332, 16
      %s334 = scalar_lea.hbm %s1, %s333
      %s335 = sadd.s32 1, %s317
      %s336 = scalar_lea.vmem [#allocation2], %s335
      // Predicated region
      $region86: #{tpu_custom_call.1} parent=80 // pred_check
        _
      $region87: #{tpu_custom_call.1} parent=80 // pred_check_branch
        %338 = sbr.rel target = $region89
      $region88: #{tpu_custom_call.1} parent=80 // pred_region
        %339 = sst [smem:[#allocation12]] [#allocation47]
        %340 = sst [smem:[#allocation13]] [#allocation46]
      $region89: #{tpu_custom_call.1} parent=80 // pred_fallthru
        _
      %342 = shalt.err (0)
      %s344 = sshll.u32 %s336, 4
      %s345 = int_to_ptr.vmem [resolvable:$true] %s344
      %347 = dma.hbm_to_vmem [thread:$0]  %s334, 16, %s345, %s319
      %s348 = sadd.s32 %s313, 2
      %s349 = sld [smem:[#allocation5 + %s348]]
      %s350 = smul.addr %s349, 16
      %s351 = scalar_lea.hbm %s1, %s350
      %s352 = sadd.s32 2, %s317
      %s353 = scalar_lea.vmem [#allocation2], %s352
      // Predicated region
      $region90: #{tpu_custom_call.1} parent=80 // pred_check
        _
      $region91: #{tpu_custom_call.1} parent=80 // pred_check_branch
        %355 = sbr.rel target = $region93
      $region92: #{tpu_custom_call.1} parent=80 // pred_region
        %356 = sst [smem:[#allocation12]] [#allocation49]
        %357 = sst [smem:[#allocation13]] [#allocation48]
      $region93: #{tpu_custom_call.1} parent=80 // pred_fallthru
        _
      %359 = shalt.err (0)
      %s361 = sshll.u32 %s353, 4
      %s362 = int_to_ptr.vmem [resolvable:$true] %s361
      %364 = dma.hbm_to_vmem [thread:$0]  %s351, 16, %s362, %s319
      %s365 = sadd.s32 %s313, 3
      %s366 = sld [smem:[#allocation5 + %s365]]
      %s367 = smul.addr %s366, 16
      %s368 = scalar_lea.hbm %s1, %s367
      %s369 = sadd.s32 3, %s317
      %s370 = scalar_lea.vmem [#allocation2], %s369
      // Predicated region
      $region94: #{tpu_custom_call.1} parent=80 // pred_check
        _
      $region95: #{tpu_custom_call.1} parent=80 // pred_check_branch
        %372 = sbr.rel target = $region97
      $region96: #{tpu_custom_call.1} parent=80 // pred_region
        %373 = sst [smem:[#allocation12]] [#allocation51]
        %374 = sst [smem:[#allocation13]] [#allocation50]
      $region97: #{tpu_custom_call.1} parent=80 // pred_fallthru
        _
      %376 = shalt.err (0)
      %s378 = sshll.u32 %s370, 4
      %s379 = int_to_ptr.vmem [resolvable:$true] %s378
      %381 = dma.hbm_to_vmem [thread:$0]  %s368, 16, %s379, %s319
      %s382 = sadd.s32 %s313, 4
      %s383 = sld [smem:[#allocation5 + %s382]]
      %s384 = smul.addr %s383, 16
      %s385 = scalar_lea.hbm %s1, %s384
      %s386 = sadd.s32 4, %s317
      %s387 = scalar_lea.vmem [#allocation2], %s386
      // Predicated region
      $region98: #{tpu_custom_call.1} parent=80 // pred_check
        _
      $region99: #{tpu_custom_call.1} parent=80 // pred_check_branch
        %389 = sbr.rel target = $region101
      $region100: #{tpu_custom_call.1} parent=80 // pred_region
        %390 = sst [smem:[#allocation12]] [#allocation53]
        %391 = sst [smem:[#allocation13]] [#allocation52]
      $region101: #{tpu_custom_call.1} parent=80 // pred_fallthru
        _
      %393 = shalt.err (0)
      %s395 = sshll.u32 %s387, 4
      %s396 = int_to_ptr.vmem [resolvable:$true] %s395
      %398 = dma.hbm_to_vmem [thread:$0]  %s385, 16, %s396, %s319
      %s399 = sadd.s32 %s313, 5
      %s400 = sld [smem:[#allocation5 + %s399]]
      %s401 = smul.addr %s400, 16
      %s402 = scalar_lea.hbm %s1, %s401
      %s403 = sadd.s32 5, %s317
      %s404 = scalar_lea.vmem [#allocation2], %s403
      // Predicated region
      $region102: #{tpu_custom_call.1} parent=80 // pred_check
        _
      $region103: #{tpu_custom_call.1} parent=80 // pred_check_branch
        %406 = sbr.rel target = $region105
      $region104: #{tpu_custom_call.1} parent=80 // pred_region
        %407 = sst [smem:[#allocation12]] [#allocation55]
        %408 = sst [smem:[#allocation13]] [#allocation54]
      $region105: #{tpu_custom_call.1} parent=80 // pred_fallthru
        _
      %410 = shalt.err (0)
      %s412 = sshll.u32 %s404, 4
      %s413 = int_to_ptr.vmem [resolvable:$true] %s412
      %415 = dma.hbm_to_vmem [thread:$0]  %s402, 16, %s413, %s319
      %s416 = sadd.s32 %s313, 6
      %s417 = sld [smem:[#allocation5 + %s416]]
      %s418 = smul.addr %s417, 16
      %s419 = scalar_lea.hbm %s1, %s418
      %s420 = sadd.s32 6, %s317
      %s421 = scalar_lea.vmem [#allocation2], %s420
      // Predicated region
      $region106: #{tpu_custom_call.1} parent=80 // pred_check
        _
      $region107: #{tpu_custom_call.1} parent=80 // pred_check_branch
        %423 = sbr.rel target = $region109
      $region108: #{tpu_custom_call.1} parent=80 // pred_region
        %424 = sst [smem:[#allocation12]] [#allocation57]
        %425 = sst [smem:[#allocation13]] [#allocation56]
      $region109: #{tpu_custom_call.1} parent=80 // pred_fallthru
        _
      %427 = shalt.err (0)
      %s429 = sshll.u32 %s421, 4
      %s430 = int_to_ptr.vmem [resolvable:$true] %s429
      %432 = dma.hbm_to_vmem [thread:$0]  %s419, 16, %s430, %s319
      %s433 = sadd.s32 %s313, 7
      %s434 = sld [smem:[#allocation5 + %s433]]
      %s435 = smul.addr %s434, 16
      %s436 = scalar_lea.hbm %s1, %s435
      %s437 = sadd.s32 7, %s317
      %s438 = scalar_lea.vmem [#allocation2], %s437
      // Predicated region
      $region110: #{tpu_custom_call.1} parent=80 // pred_check
        _
      $region111: #{tpu_custom_call.1} parent=80 // pred_check_branch
        %440 = sbr.rel target = $region113
      $region112: #{tpu_custom_call.1} parent=80 // pred_region
        %441 = sst [smem:[#allocation12]] [#allocation59]
        %442 = sst [smem:[#allocation13]] [#allocation58]
      $region113: #{tpu_custom_call.1} parent=80 // pred_fallthru
        _
      %444 = shalt.err (0)
      %s446 = sshll.u32 %s438, 4
      %s447 = int_to_ptr.vmem [resolvable:$true] %s446
      %449 = dma.hbm_to_vmem [thread:$0]  %s436, 16, %s447, %s319
      %s450 = sadd.s32 %s313, 8
      %s451 = sld [smem:[#allocation5 + %s450]]
      %s452 = smul.addr %s451, 16
      %s453 = scalar_lea.hbm %s1, %s452
      %s454 = sadd.s32 8, %s317
      %s455 = scalar_lea.vmem [#allocation2], %s454
      // Predicated region
      $region114: #{tpu_custom_call.1} parent=80 // pred_check
        _
      $region115: #{tpu_custom_call.1} parent=80 // pred_check_branch
        %457 = sbr.rel target = $region117
      $region116: #{tpu_custom_call.1} parent=80 // pred_region
        %458 = sst [smem:[#allocation12]] [#allocation61]
        %459 = sst [smem:[#allocation13]] [#allocation60]
      $region117: #{tpu_custom_call.1} parent=80 // pred_fallthru
        _
      %461 = shalt.err (0)
      %s463 = sshll.u32 %s455, 4
      %s464 = int_to_ptr.vmem [resolvable:$true] %s463
      %466 = dma.hbm_to_vmem [thread:$0]  %s453, 16, %s464, %s319
      %s467 = sadd.s32 %s313, 9
      %s468 = sld [smem:[#allocation5 + %s467]]
      %s469 = smul.addr %s468, 16
      %s470 = scalar_lea.hbm %s1, %s469
      %s471 = sadd.s32 9, %s317
      %s472 = scalar_lea.vmem [#allocation2], %s471
      // Predicated region
      $region118: #{tpu_custom_call.1} parent=80 // pred_check
        _
      $region119: #{tpu_custom_call.1} parent=80 // pred_check_branch
        %474 = sbr.rel target = $region121
      $region120: #{tpu_custom_call.1} parent=80 // pred_region
        %475 = sst [smem:[#allocation12]] [#allocation63]
        %476 = sst [smem:[#allocation13]] [#allocation62]
      $region121: #{tpu_custom_call.1} parent=80 // pred_fallthru
        _
      %478 = shalt.err (0)
      %s480 = sshll.u32 %s472, 4
      %s481 = int_to_ptr.vmem [resolvable:$true] %s480
      %483 = dma.hbm_to_vmem [thread:$0]  %s470, 16, %s481, %s319
      %s484 = sadd.s32 %s313, 10
      %s485 = sld [smem:[#allocation5 + %s484]]
      %s486 = smul.addr %s485, 16
      %s487 = scalar_lea.hbm %s1, %s486
      %s488 = sadd.s32 10, %s317
      %s489 = scalar_lea.vmem [#allocation2], %s488
      // Predicated region
      $region122: #{tpu_custom_call.1} parent=80 // pred_check
        _
      $region123: #{tpu_custom_call.1} parent=80 // pred_check_branch
        %491 = sbr.rel target = $region125
      $region124: #{tpu_custom_call.1} parent=80 // pred_region
        %492 = sst [smem:[#allocation12]] [#allocation65]
        %493 = sst [smem:[#allocation13]] [#allocation64]
      $region125: #{tpu_custom_call.1} parent=80 // pred_fallthru
        _
      %495 = shalt.err (0)
      %s497 = sshll.u32 %s489, 4
      %s498 = int_to_ptr.vmem [resolvable:$true] %s497
      %500 = dma.hbm_to_vmem [thread:$0]  %s487, 16, %s498, %s319
      %s501 = sadd.s32 %s313, 11
      %s502 = sld [smem:[#allocation5 + %s501]]
      %s503 = smul.addr %s502, 16
      %s504 = scalar_lea.hbm %s1, %s503
      %s505 = sadd.s32 11, %s317
      %s506 = scalar_lea.vmem [#allocation2], %s505
      // Predicated region
      $region126: #{tpu_custom_call.1} parent=80 // pred_check
        _
      $region127: #{tpu_custom_call.1} parent=80 // pred_check_branch
        %508 = sbr.rel target = $region129
      $region128: #{tpu_custom_call.1} parent=80 // pred_region
        %509 = sst [smem:[#allocation12]] [#allocation67]
        %510 = sst [smem:[#allocation13]] [#allocation66]
      $region129: #{tpu_custom_call.1} parent=80 // pred_fallthru
        _
      %512 = shalt.err (0)
      %s514 = sshll.u32 %s506, 4
      %s515 = int_to_ptr.vmem [resolvable:$true] %s514
      %517 = dma.hbm_to_vmem [thread:$0]  %s504, 16, %s515, %s319
      %s518 = sadd.s32 %s313, 12
      %s519 = sld [smem:[#allocation5 + %s518]]
      %s520 = smul.addr %s519, 16
      %s521 = scalar_lea.hbm %s1, %s520
      %s522 = sadd.s32 12, %s317
      %s523 = scalar_lea.vmem [#allocation2], %s522
      // Predicated region
      $region130: #{tpu_custom_call.1} parent=80 // pred_check
        _
      $region131: #{tpu_custom_call.1} parent=80 // pred_check_branch
        %525 = sbr.rel target = $region133
      $region132: #{tpu_custom_call.1} parent=80 // pred_region
        %526 = sst [smem:[#allocation12]] [#allocation69]
        %527 = sst [smem:[#allocation13]] [#allocation68]
      $region133: #{tpu_custom_call.1} parent=80 // pred_fallthru
        _
      %529 = shalt.err (0)
      %s531 = sshll.u32 %s523, 4
      %s532 = int_to_ptr.vmem [resolvable:$true] %s531
      %534 = dma.hbm_to_vmem [thread:$0]  %s521, 16, %s532, %s319
      %s535 = sadd.s32 %s313, 13
      %s536 = sld [smem:[#allocation5 + %s535]]
      %s537 = smul.addr %s536, 16
      %s538 = scalar_lea.hbm %s1, %s537
      %s539 = sadd.s32 13, %s317
      %s540 = scalar_lea.vmem [#allocation2], %s539
      // Predicated region
      $region134: #{tpu_custom_call.1} parent=80 // pred_check
        _
      $region135: #{tpu_custom_call.1} parent=80 // pred_check_branch
        %542 = sbr.rel target = $region137
      $region136: #{tpu_custom_call.1} parent=80 // pred_region
        %543 = sst [smem:[#allocation12]] [#allocation71]
        %544 = sst [smem:[#allocation13]] [#allocation70]
      $region137: #{tpu_custom_call.1} parent=80 // pred_fallthru
        _
      %546 = shalt.err (0)
      %s548 = sshll.u32 %s540, 4
      %s549 = int_to_ptr.vmem [resolvable:$true] %s548
      %551 = dma.hbm_to_vmem [thread:$0]  %s538, 16, %s549, %s319
      %s552 = sadd.s32 %s313, 14
      %s553 = sld [smem:[#allocation5 + %s552]]
      %s554 = smul.addr %s553, 16
      %s555 = scalar_lea.hbm %s1, %s554
      %s556 = sadd.s32 14, %s317
      %s557 = scalar_lea.vmem [#allocation2], %s556
      // Predicated region
      $region138: #{tpu_custom_call.1} parent=80 // pred_check
        _
      $region139: #{tpu_custom_call.1} parent=80 // pred_check_branch
        %559 = sbr.rel target = $region141
      $region140: #{tpu_custom_call.1} parent=80 // pred_region
        %560 = sst [smem:[#allocation12]] [#allocation73]
        %561 = sst [smem:[#allocation13]] [#allocation72]
      $region141: #{tpu_custom_call.1} parent=80 // pred_fallthru
        _
      %563 = shalt.err (0)
      %s565 = sshll.u32 %s557, 4
      %s566 = int_to_ptr.vmem [resolvable:$true] %s565
      %568 = dma.hbm_to_vmem [thread:$0]  %s555, 16, %s566, %s319
      %s569 = sadd.s32 %s313, 15
      %s570 = sld [smem:[#allocation5 + %s569]]
      %s571 = smul.addr %s570, 16
      %s572 = scalar_lea.hbm %s1, %s571
      %s573 = sadd.s32 15, %s317
      %s574 = scalar_lea.vmem [#allocation2], %s573
      // Predicated region
      $region142: #{tpu_custom_call.1} parent=80 // pred_check
        _
      $region143: #{tpu_custom_call.1} parent=80 // pred_check_branch
        %576 = sbr.rel target = $region145
      $region144: #{tpu_custom_call.1} parent=80 // pred_region
        %577 = sst [smem:[#allocation12]] [#allocation75]
        %578 = sst [smem:[#allocation13]] [#allocation74]
      $region145: #{tpu_custom_call.1} parent=80 // pred_fallthru
        _
      %580 = shalt.err (0)
      %s582 = sshll.u32 %s574, 4
      %s583 = int_to_ptr.vmem [resolvable:$true] %s582
      %585 = dma.hbm_to_vmem [thread:$0]  %s572, 16, %s583, %s319
    $region81: #{tpu_custom_call.1} parent=1 // pred_fallthru
      _
    %s586 = smul.u32 0, 16
    %s587 = scalar_lea.vmem [#allocation2], %s586
    %s588 = smul.u32 16, 1
    %s589 = sshll.u32 %s588, 4
    %590 = dma.done [#allocation3], %s589
    %v591 = vld [vmem:[%s587] sm:$0xff]
    %v592 = vld [vmem:[%s587 + $0x8] sm:$0xff]
    %v593 = vld [vmem:[#allocation6] sm:$0xff]
    %v594 = vld [vmem:[#allocation6 + $0x8] sm:$0xff]
    %v595 = vadd.f32 %v591, %v593
    %v596 = vadd.f32 %v592, %v594
    %597 = vst [vmem:[#allocation9] sm:$0xff] %v595
    %598 = vst [vmem:[#allocation9 + $0x8] sm:$0xff] %v596
    // Predicated region
    $region146: #{tpu_custom_call.1} parent=1 // pred_check
      _
    $region147: #{tpu_custom_call.1} parent=1 // pred_check_branch
      %600 = sbr.rel (0) target = $region149
    $region148: #{tpu_custom_call.1} parent=1 // pred_region
      %s602 = ssub.s32 256, 256
      %603 = vsyncadd [#allocation8], %s602
      %s604 = sshll.u32 [#allocation9], 4
      %s605 = int_to_ptr.vmem [resolvable:$true] %s604
      %610 = dma.vmem_to_hbm [thread:$0]  %s605, 256, %s3, [#allocation8], 128, 128, 8
    $region149: #{tpu_custom_call.1} parent=1 // pred_fallthru
      _
    // Predicated region
    $region150: #{tpu_custom_call.1} parent=1 // pred_check
      _
    $region151: #{tpu_custom_call.1} parent=1 // pred_check_branch
      %612 = sbr.rel (0) target = $region153
    $region152: #{tpu_custom_call.1} parent=1 // pred_region
      %613 = dma.done [#allocation8], 256
    $region153: #{tpu_custom_call.1} parent=1 // pred_fallthru
      _
    %614 = vsyncpa [#allocation7], 1
    %615 = vsyncpa [#allocation8], 1
  %616 = vsyncmov [#allocation3]
  %s617 = vpop.sfrf %616
  %p618 = scmp.eq.s32.totalorder %s617, 0
  %p619 = pneg %p618
  %621 = shalt.err (%p619)
  %s622 = scalar_lea.sflag [#allocation3], 1
  %623 = vsyncmov %s622
  %s624 = vpop.sfrf %623
  %p625 = scmp.eq.s32.totalorder %s624, 0
  %p626 = pneg %p625
  %628 = shalt.err (%p626)

</llo_original>
